<compile_context>
chip_gen: v7x
topology: tpu7x:2x2x1
jax: 0.10.0
libtpu: 0.0.40
codegen_flags: <defaults>
</compile_context>

<pallas_src>
import functools
import math

import jax
import jax.numpy as jnp
from jax import lax
from jax.experimental import pallas as pl
from jax.experimental.pallas import tpu as pltpu

EPS = 1e-5        # PyTorch LayerNorm default eps
NEG_INF = -1e9    # additive mask value (kept in f32)

# Row layout of the packed per-layer vector array (L, 16, max(D, H)).
ROW_BQ, ROW_BK, ROW_BV, ROW_BO = 0, 1, 2, 3
ROW_LN1G, ROW_LN1B, ROW_B2, ROW_LN2G, ROW_LN2B, ROW_B1 = 4, 5, 6, 7, 8, 9
VEC_ROWS = 16


def _vmem_limit_bytes():
    # Generation-aware VMEM budget (~75% of physical): ~48 MiB on v7x, ~96 MiB on v5e/v6e.
    try:
        return int(pltpu.get_tpu_info().vmem_capacity_bytes * 0.75)
    except Exception:
        return 64 * 1024 * 1024


def _layer_norm(x, gamma, beta):
    mu = jnp.mean(x, axis=-1, keepdims=True)
    var = jnp.mean((x - mu) ** 2, axis=-1, keepdims=True)
    return (x - mu) * lax.rsqrt(var + EPS) * gamma + beta


# ----------------------------------------------------------------------------
# Kernel 1: fused (embedding-LN prologue + full transformer encoder stack)
#   grid = (B//Bt, num_layers); the output block (b, 0, 0) is constant along the layer
#   axis, so the (Bt, S, D) activation stays resident in VMEM across all layers.
# ----------------------------------------------------------------------------
def stack_kernel(xin_ref, kp_ref,
                 embg_ref, embb_ref,
                 wqkv_ref, wo_ref, w1_ref, w2_ref, vec_ref,
                 o_ref,
                 q_sc, k_sc, v_sc, ctx_sc,
                 *, num_heads, head_dim, hidden_dim, causal):
    l = pl.program_id(1)
    Bt, S, D = o_ref.shape
    H = hidden_dim
    dh = head_dim
    scale = jnp.float32(1.0 / math.sqrt(dh))

    # Layer-0 prologue: TokenEmbedding tail (token+pos add done in glue, LN here).
    @pl.when(l == 0)
    def _():
        e = _layer_norm(xin_ref[...].reshape(Bt * S, D), embg_ref[...], embb_ref[...])
        o_ref[...] = e.reshape(Bt, S, D)

    x = o_ref[...].reshape(Bt * S, D)         # f32, resident across layers
    x_bf = x.astype(jnp.bfloat16)

    # Unpack per-layer small vectors (one DMA'd (16, P) slab per layer).
    vec = vec_ref[0]
    bq = vec[ROW_BQ:ROW_BQ + 1, :D]
    bk = vec[ROW_BK:ROW_BK + 1, :D]
    bv = vec[ROW_BV:ROW_BV + 1, :D]
    bo = vec[ROW_BO:ROW_BO + 1, :D]
    ln1g = vec[ROW_LN1G:ROW_LN1G + 1, :D]
    ln1b = vec[ROW_LN1B:ROW_LN1B + 1, :D]
    ln2g = vec[ROW_LN2G:ROW_LN2G + 1, :D]
    ln2b = vec[ROW_LN2B:ROW_LN2B + 1, :D]
    b1 = vec[ROW_B1:ROW_B1 + 1, :H]
    b2 = vec[ROW_B2:ROW_B2 + 1, :D]

    # Fused full-width QKV projection: bf16 operands, f32 accumulation on MXU.
    qkv = jnp.dot(x_bf, wqkv_ref[0], preferred_element_type=jnp.float32)   # (Bt*S, 3D)
    # Fold 1/sqrt(dh) into q once; stage q/k/v into bf16 VMEM scratch (bounds live ranges).
    q_sc[...] = ((qkv[:, 0:D] + bq) * scale).astype(jnp.bfloat16).reshape(Bt, S, D)
    k_sc[...] = (qkv[:, D:2 * D] + bk).astype(jnp.bfloat16).reshape(Bt, S, D)
    v_sc[...] = (qkv[:, 2 * D:3 * D] + bv).astype(jnp.bfloat16).reshape(Bt, S, D)

    kp = kp_ref[...]                          # (Bt, 1, S) additive key-padding bias (0/-1e9)

    for h in range(num_heads):
        sl = slice(h * dh, (h + 1) * dh)
        q_h = q_sc[:, :, sl]                  # (Bt, S, dh) bf16
        k_h = k_sc[:, :, sl]
        v_h = v_sc[:, :, sl]
        # Contraction on last dims (no explicit k.T transpose).
        s = jnp.einsum('bqd,bkd->bqk', q_h, k_h,
                       preferred_element_type=jnp.float32)                 # (Bt, S, S) f32
        s = s + kp
        if causal:
            row = lax.broadcasted_iota(jnp.int32, (S, S), 0)
            col = lax.broadcasted_iota(jnp.int32, (S, S), 1)
            s = jnp.where((col <= row)[None, :, :], s, NEG_INF)
        # NOTE: rows whose entire causal window is padding get a uniform (finite)
        # distribution over masked keys instead of NaN (outputs there are discarded anyway).
        m = jnp.max(s, axis=-1, keepdims=True)
        p = jnp.exp(s - m)
        p = p * pl.reciprocal(jnp.sum(p, axis=-1, keepdims=True), approx=True)
        ctx = jnp.einsum('bqk,bkd->bqd', p.astype(jnp.bfloat16), v_h,
                         preferred_element_type=jnp.float32)               # (Bt, S, dh)
        # Write ctx_h into its column slice of the concat slab (physical concat of heads).
        ctx_sc[:, :, sl] = ctx.astype(jnp.bfloat16)

    # ONE full-width output projection: concat(ctx_h) @ wo.
    attn = jnp.dot(ctx_sc[...].reshape(Bt * S, D), wo_ref[0],
                   preferred_element_type=jnp.float32) + bo

    # Post-LN encoder layer (PyTorch TransformerEncoderLayer default, eval mode).
    h1 = _layer_norm(x + attn, ln1g, ln1b)
    ff = jnp.maximum(
        jnp.dot(h1.astype(jnp.bfloat16), w1_ref[0],
                preferred_element_type=jnp.float32) + b1, 0.0)
    ff = jnp.dot(ff.astype(jnp.bfloat16), w2_ref[0],
                 preferred_element_type=jnp.float32) + b2
    o_ref[...] = _layer_norm(h1 + ff, ln2g, ln2b).reshape(Bt, S, D)


def _pick_batch_tile(B, S, D, H, vmem_limit):
    """Largest divisor of B whose rough per-step VMEM footprint fits the budget."""
    wbytes = 2 * (3 * D * D + D * D + D * H + H * D) * 2   # double-buffered bf16 weights

    def fits(bt):
        act = 2 * 2 * bt * S * D * 4                 # in + out f32 blocks, double-buffered
        scr = 4 * bt * S * D * 2                     # q/k/v/ctx bf16 scratch
        tmp = bt * S * (3 * D + 2 * H) * 4           # qkv / ffn f32 intermediates
        score = 2 * bt * S * S * 4                   # score + prob tiles (one head live)
        return act + scr + tmp + score + wbytes <= vmem_limit * 0.9

    bt = B
    while bt > 1 and not fits(bt):
        bt -= 1
        while B % bt:
            bt -= 1
    return max(bt, 1)


def transformer_stack(xin, kp_bias, params, num_heads, hidden_dim, causal):
    B, S, D = xin.shape
    L = params["wqkv"].shape[0]
    H = hidden_dim
    P = params["vec"].shape[2]
    vmem_limit = _vmem_limit_bytes()
    Bt = _pick_batch_tile(B, S, D, H, vmem_limit)

    # On small-VMEM parts (v7x) drop the FFN weights to single-buffering when they are large.
    ffn_kwargs = {}
    if 2 * (D * H + H * D) * 2 > vmem_limit // 2:
        ffn_kwargs = {"pipeline_mode": pl.Buffered(1)}

    kern = functools.partial(stack_kernel, num_heads=num_heads,
                             head_dim=D // num_heads, hidden_dim=H, causal=causal)
    return pl.pallas_call(
        kern,
        out_shape=jax.ShapeDtypeStruct((B, S, D), jnp.float32),
        grid=(B // Bt, L),
        in_specs=[
            pl.BlockSpec((Bt, S, D), lambda b, l: (b, 0, 0)),       # emb + pos
            pl.BlockSpec((Bt, 1, S), lambda b, l: (b, 0, 0)),       # key-padding bias
            pl.BlockSpec((1, D), lambda b, l: (0, 0)),              # embedding LN gamma
            pl.BlockSpec((1, D), lambda b, l: (0, 0)),              # embedding LN beta
            pl.BlockSpec((1, D, 3 * D), lambda b, l: (l, 0, 0)),    # wqkv (fused)
            pl.BlockSpec((1, D, D), lambda b, l: (l, 0, 0)),        # wo
            pl.BlockSpec((1, D, H), lambda b, l: (l, 0, 0), **ffn_kwargs),   # w1
            pl.BlockSpec((1, H, D), lambda b, l: (l, 0, 0), **ffn_kwargs),   # w2
            pl.BlockSpec((1, VEC_ROWS, P), lambda b, l: (l, 0, 0)), # packed per-layer vectors
        ],
        out_specs=pl.BlockSpec((Bt, S, D), lambda b, l: (b, 0, 0)),
        scratch_shapes=[pltpu.VMEM((Bt, S, D), jnp.bfloat16)] * 4,  # q, k, v, ctx slabs
        compiler_params=pltpu.CompilerParams(
            dimension_semantics=("parallel", "arbitrary"),
            vmem_limit_bytes=vmem_limit),
    )(xin, kp_bias,
      params["emb_ln_g"], params["emb_ln_b"],
      params["wqkv"], params["wo"], params["w1"], params["w2"], params["vec"])


# ----------------------------------------------------------------------------
# Kernel 2: output head (LayerNorm + Linear to vocab logits), vocab-tiled.
#   LN computed once per batch row (first vocab tile) into a bf16 VMEM scratch.
# ----------------------------------------------------------------------------
def head_kernel(x_ref, g_ref, b_ref, w_ref, bo_ref, o_ref, xn_sc):
    @pl.when(pl.program_id(1) == 0)
    def _():
        xn_sc[...] = _layer_norm(x_ref[0], g_ref[...], b_ref[...]).astype(jnp.bfloat16)
    o_ref[0] = (jnp.dot(xn_sc[...], w_ref[...],
                        preferred_element_type=jnp.float32) + bo_ref[...])


def _pick_vocab_tile(V, S, D, vmem_limit):
    if V % 128 != 0:
        # TODO(synk): pad V to a multiple of 128 for lane-dense logits on odd vocab sizes.
        return V
    for t in (2048, 1024, 512, 256, 128):
        if V % t != 0:
            continue
        need = (2 * S * t * 4        # double-buffered f32 output tile
                + 2 * D * t * 2      # double-buffered bf16 weight tile
                + 2 * t * 4          # bias tile
                + 2 * S * D * 4      # x block (double-buffered)
                + S * D * 2)         # xn scratch
        if need <= vmem_limit * 0.8:
            return t
    return 128


def output_head(x, gamma, beta, w, b):
    B, S, D = x.shape
    V = w.shape[1]
    vmem_limit = _vmem_limit_bytes()
    TV = _pick_vocab_tile(V, S, D, vmem_limit)
    return pl.pallas_call(
        head_kernel,
        out_shape=jax.ShapeDtypeStruct((B, S, V), jnp.float32),
        grid=(B, V // TV),
        in_specs=[
            pl.BlockSpec((1, S, D), lambda i, j: (i, 0, 0)),
            pl.BlockSpec((1, D), lambda i, j: (0, 0)),
            pl.BlockSpec((1, D), lambda i, j: (0, 0)),
            pl.BlockSpec((D, TV), lambda i, j: (0, j)),
            pl.BlockSpec((1, TV), lambda i, j: (0, j)),
        ],
        out_specs=pl.BlockSpec((1, S, TV), lambda i, j: (i, 0, j)),
        scratch_shapes=[pltpu.VMEM((S, D), jnp.bfloat16)],
        compiler_params=pltpu.CompilerParams(
            dimension_semantics=("parallel", "arbitrary"),
            vmem_limit_bytes=vmem_limit),
    )(x, gamma, beta, w, b)


# ----------------------------------------------------------------------------
# Parameter init (deterministic, synthetic).  Matmul weights are bf16, fused/stacked along
# a leading layer axis; all small per-layer vectors are packed into one (L, 16, P) array.
# ----------------------------------------------------------------------------
def init_params(key, vocab_size, D, nh, H, max_seq_len, num_layers):
    keys = iter(jax.random.split(key, 12))
    scale = 0.02
    L = num_layers
    P = max(D, H)

    def nrm(shape, dtype=jnp.float32):
        return (jax.random.normal(next(keys), shape, jnp.float32) * scale).astype(dtype)

    vec = jnp.zeros((L, VEC_ROWS, P), jnp.float32)
    vec = vec.at[:, ROW_LN1G, :D].set(1.0)
    vec = vec.at[:, ROW_LN2G, :D].set(1.0)
    # All linear biases start at zero (rows ROW_BQ..ROW_B1 stay zero), matching the prior init.

    return {
        "tok_emb": nrm((vocab_size, D)),
        "pos_emb": jax.random.normal(next(keys), (1, max_seq_len, D), jnp.float32)
                   / math.sqrt(D),
        "emb_ln_g": jnp.ones((1, D), jnp.float32),
        "emb_ln_b": jnp.zeros((1, D), jnp.float32),
        "head_ln_g": jnp.ones((1, D), jnp.float32),
        "head_ln_b": jnp.zeros((1, D), jnp.float32),
        "head_w": nrm((D, vocab_size), jnp.bfloat16),
        "head_b": jnp.zeros((1, vocab_size), jnp.float32),
        "wqkv": nrm((L, D, 3 * D), jnp.bfloat16),
        "wo": nrm((L, D, D), jnp.bfloat16),
        "w1": nrm((L, D, H), jnp.bfloat16),
        "w2": nrm((L, H, D), jnp.bfloat16),
        "vec": vec,
    }


# ----------------------------------------------------------------------------
# Full forward (memory_less TTM): embed -> transformer stack -> output head
# ----------------------------------------------------------------------------
def ttm_forward(params, tokens, num_heads, hidden_dim, padding_token=0, causal=True):
    B, S = tokens.shape
    # Glue: embedding gather + positional add (gather has no cheap rectangular-DMA
    # equivalent).  Only a tiny (B, 1, S) key-padding bias is passed to the kernel;
    # the causal mask is rebuilt in-kernel from iotas.
    emb = jnp.take(params["tok_emb"], tokens, axis=0)            # (B, S, D)
    xin = emb + params["pos_emb"][:, :S, :]
    kp_bias = jnp.where(tokens == padding_token, NEG_INF, 0.0).astype(jnp.float32)[:, None, :]

    x = transformer_stack(xin, kp_bias, params, num_heads, hidden_dim, causal)
    logits = output_head(x, params["head_ln_g"], params["head_ln_b"],
                         params["head_w"], params["head_b"])
    new_memory = None  # memory_less path
    return logits, new_memory


if __name__ == "__main__":
    # Small synthetic configuration consistent with the module's forward.
    VOCAB = 64
    D = 32
    NUM_HEADS = 4
    HIDDEN = 64
    NUM_LAYERS = 2
    MAX_SEQ = 16
    B, S = 2, 8

    key = jax.random.PRNGKey(0)
    pkey, tkey = jax.random.split(key)
    params = init_params(pkey, VOCAB, D, NUM_HEADS, HIDDEN, MAX_SEQ, NUM_LAYERS)
    # tokens in [1, VOCAB) so none coincide with padding_token=0
    tokens = jax.random.randint(tkey, (B, S), 1, VOCAB, dtype=jnp.int32)

    logits, new_memory = ttm_forward(params, tokens, NUM_HEADS, HIDDEN)
    logits = jax.block_until_ready(logits)
    assert logits.shape == (B, S, VOCAB)
    assert bool(jnp.all(jnp.isfinite(logits)))
    print("KERNEL_OK")
</pallas_src>

<mosaic_0001>
module attributes {stable_mosaic.version = 11 : i64} {
  func.func @stack_kernel(%arg0: i32, %arg1: i32, %arg2: memref<2x8x32xf32, #tpu.memory_space<vmem>>, %arg3: memref<2x1x8xf32, #tpu.memory_space<vmem>>, %arg4: memref<1x32xf32, #tpu.memory_space<vmem>>, %arg5: memref<1x32xf32, #tpu.memory_space<vmem>>, %arg6: memref<1x32x96xbf16, #tpu.memory_space<vmem>>, %arg7: memref<1x32x32xbf16, #tpu.memory_space<vmem>>, %arg8: memref<1x32x64xbf16, #tpu.memory_space<vmem>>, %arg9: memref<1x64x32xbf16, #tpu.memory_space<vmem>>, %arg10: memref<1x16x64xf32, #tpu.memory_space<vmem>>, %arg11: memref<2x8x32xf32, #tpu.memory_space<vmem>>, %arg12: memref<2x8x32xbf16, #tpu.memory_space<vmem>>, %arg13: memref<2x8x32xbf16, #tpu.memory_space<vmem>>, %arg14: memref<2x8x32xbf16, #tpu.memory_space<vmem>>, %arg15: memref<2x8x32xbf16, #tpu.memory_space<vmem>>) attributes {dimension_semantics = [#tpu.dimension_semantics<parallel>, #tpu.dimension_semantics<arbitrary>], iteration_bounds = array<i64: 1, 2>, scalar_prefetch = 0 : i64, scratch_operands = 4 : i64, tpu.core_type = #tpu.core_type<tc>, window_params = [{transform_indices = @transform_0, window_bounds = array<i64: 2, 8, 32>}, {transform_indices = @transform_1, window_bounds = array<i64: 2, 1, 8>}, {pipeline_mode = #tpu.pipeline_mode<synchronous>, transform_indices = @transform_2, window_bounds = array<i64: 1, 32>}, {pipeline_mode = #tpu.pipeline_mode<synchronous>, transform_indices = @transform_3, window_bounds = array<i64: 1, 32>}, {transform_indices = @transform_4, window_bounds = array<i64: 1, 32, 96>}, {transform_indices = @transform_5, window_bounds = array<i64: 1, 32, 32>}, {transform_indices = @transform_6, window_bounds = array<i64: 1, 32, 64>}, {transform_indices = @transform_7, window_bounds = array<i64: 1, 64, 32>}, {transform_indices = @transform_8, window_bounds = array<i64: 1, 16, 64>}, {transform_indices = @transform_9, window_bounds = array<i64: 2, 8, 32>}]} {
    %c0_i32 = arith.constant 0 : i32
    %0 = arith.cmpi eq, %arg1, %c0_i32 : i32
    %1 = arith.extui %0 : i1 to i32
    %c0_i32_0 = arith.constant 0 : i32
    %2 = arith.cmpi ne, %1, %c0_i32_0 : i32
    scf.if %2 {
      %c0_116 = arith.constant 0 : index
      %c0_117 = arith.constant 0 : index
      %c0_118 = arith.constant 0 : index
      %223 = vector.load %arg2[%c0_116, %c0_117, %c0_118] : memref<2x8x32xf32, #tpu.memory_space<vmem>>, vector<2x8x32xf32>
      %224 = vector.shape_cast %223 : vector<2x8x32xf32> to vector<16x32xf32>
      %c0_119 = arith.constant 0 : index
      %c0_120 = arith.constant 0 : index
      %225 = vector.load %arg4[%c0_119, %c0_120] : memref<1x32xf32, #tpu.memory_space<vmem>>, vector<1x32xf32>
      %c0_121 = arith.constant 0 : index
      %c0_122 = arith.constant 0 : index
      %226 = vector.load %arg5[%c0_121, %c0_122] : memref<1x32xf32, #tpu.memory_space<vmem>>, vector<1x32xf32>
      %cst_123 = arith.constant dense<0.000000e+00> : vector<16xf32>
      %227 = vector.multi_reduction <add>, %224, %cst_123 [1] : vector<16x32xf32> to vector<16xf32>
      %228 = vector.shape_cast %227 : vector<16xf32> to vector<16x1xf32>
      %cst_124 = arith.constant 3.200000e+01 : f32
      %229 = vector.broadcast %cst_124 : f32 to vector<16x1xf32>
      %230 = arith.divf %228, %229 : vector<16x1xf32>
      %231 = vector.broadcast %230 : vector<16x1xf32> to vector<16x32xf32>
      %232 = arith.subf %224, %231 : vector<16x32xf32>
      %233 = arith.mulf %232, %232 : vector<16x32xf32>
      %cst_125 = arith.constant dense<0.000000e+00> : vector<16xf32>
      %234 = vector.multi_reduction <add>, %233, %cst_125 [1] : vector<16x32xf32> to vector<16xf32>
      %235 = vector.shape_cast %234 : vector<16xf32> to vector<16x1xf32>
      %cst_126 = arith.constant 3.200000e+01 : f32
      %236 = vector.broadcast %cst_126 : f32 to vector<16x1xf32>
      %237 = arith.divf %235, %236 : vector<16x1xf32>
      %238 = vector.broadcast %230 : vector<16x1xf32> to vector<16x32xf32>
      %239 = arith.subf %224, %238 : vector<16x32xf32>
      %cst_127 = arith.constant 9.99999974E-6 : f32
      %240 = vector.broadcast %cst_127 : f32 to vector<16x1xf32>
      %241 = arith.addf %237, %240 : vector<16x1xf32>
      %242 = math.rsqrt %241 : vector<16x1xf32>
      %243 = vector.broadcast %242 : vector<16x1xf32> to vector<16x32xf32>
      %244 = arith.mulf %239, %243 : vector<16x32xf32>
      %245 = vector.broadcast %225 : vector<1x32xf32> to vector<16x32xf32>
      %246 = arith.mulf %244, %245 : vector<16x32xf32>
      %247 = vector.broadcast %226 : vector<1x32xf32> to vector<16x32xf32>
      %248 = arith.addf %246, %247 : vector<16x32xf32>
      %249 = vector.shape_cast %248 : vector<16x32xf32> to vector<2x8x32xf32>
      %c0_128 = arith.constant 0 : index
      %c0_129 = arith.constant 0 : index
      %c0_130 = arith.constant 0 : index
      %250 = vector.load %arg11[%c0_128, %c0_129, %c0_130] : memref<2x8x32xf32, #tpu.memory_space<vmem>>, vector<2x8x32xf32>
      tpu.vector_store %arg11[%c0_128, %c0_129, %c0_130], %249 {strides = array<i32>} : memref<2x8x32xf32, #tpu.memory_space<vmem>>, vector<2x8x32xf32>,
    } else {
    }
    %c0 = arith.constant 0 : index
    %c0_1 = arith.constant 0 : index
    %c0_2 = arith.constant 0 : index
    %3 = vector.load %arg11[%c0, %c0_1, %c0_2] : memref<2x8x32xf32, #tpu.memory_space<vmem>>, vector<2x8x32xf32>
    %4 = vector.shape_cast %3 : vector<2x8x32xf32> to vector<16x32xf32>
    %5 = arith.truncf %4 : vector<16x32xf32> to vector<16x32xbf16>
    %c0_3 = arith.constant 0 : index
    %c0_4 = arith.constant 0 : index
    %c0_5 = arith.constant 0 : index
    %6 = vector.load %arg10[%c0_3, %c0_4, %c0_5] : memref<1x16x64xf32, #tpu.memory_space<vmem>>, vector<1x16x64xf32>
    %7 = vector.shape_cast %6 : vector<1x16x64xf32> to vector<16x64xf32>
    %8 = vector.extract_strided_slice %7 {offsets = [0, 0], sizes = [1, 32], strides = [1, 1]} : vector<16x64xf32> to vector<1x32xf32>
    %9 = vector.extract_strided_slice %7 {offsets = [1, 0], sizes = [1, 32], strides = [1, 1]} : vector<16x64xf32> to vector<1x32xf32>
    %10 = vector.extract_strided_slice %7 {offsets = [2, 0], sizes = [1, 32], strides = [1, 1]} : vector<16x64xf32> to vector<1x32xf32>
    %11 = vector.extract_strided_slice %7 {offsets = [3, 0], sizes = [1, 32], strides = [1, 1]} : vector<16x64xf32> to vector<1x32xf32>
    %12 = vector.extract_strided_slice %7 {offsets = [4, 0], sizes = [1, 32], strides = [1, 1]} : vector<16x64xf32> to vector<1x32xf32>
    %13 = vector.extract_strided_slice %7 {offsets = [5, 0], sizes = [1, 32], strides = [1, 1]} : vector<16x64xf32> to vector<1x32xf32>
    %14 = vector.extract_strided_slice %7 {offsets = [7, 0], sizes = [1, 32], strides = [1, 1]} : vector<16x64xf32> to vector<1x32xf32>
    %15 = vector.extract_strided_slice %7 {offsets = [8, 0], sizes = [1, 32], strides = [1, 1]} : vector<16x64xf32> to vector<1x32xf32>
    %16 = vector.extract_strided_slice %7 {offsets = [9, 0], sizes = [1, 64], strides = [1, 1]} : vector<16x64xf32> to vector<1x64xf32>
    %17 = vector.extract_strided_slice %7 {offsets = [6, 0], sizes = [1, 32], strides = [1, 1]} : vector<16x64xf32> to vector<1x32xf32>
    %c0_6 = arith.constant 0 : index
    %c0_7 = arith.constant 0 : index
    %c0_8 = arith.constant 0 : index
    %18 = vector.load %arg6[%c0_6, %c0_7, %c0_8] : memref<1x32x96xbf16, #tpu.memory_space<vmem>>, vector<1x32x96xbf16>
    %19 = vector.shape_cast %18 : vector<1x32x96xbf16> to vector<32x96xbf16>
    %cst = arith.constant dense<0.000000e+00> : vector<16x96xf32>
    %20 = tpu.matmul %5, %19, %cst {dimension_numbers = #tpu.dot_dimension_numbers<[1], [0], [0], [1], [0, 0, 1, 1], [], []>} : vector<16x32xbf16>, vector<32x96xbf16>, vector<16x96xf32> -> vector<16x96xf32>
    %21 = vector.extract_strided_slice %20 {offsets = [0, 0], sizes = [16, 32], strides = [1, 1]} : vector<16x96xf32> to vector<16x32xf32>
    %22 = vector.broadcast %8 : vector<1x32xf32> to vector<16x32xf32>
    %23 = arith.addf %21, %22 : vector<16x32xf32>
    %cst_9 = arith.constant 0.353553385 : f32
    %24 = vector.broadcast %cst_9 : f32 to vector<16x32xf32>
    %25 = arith.mulf %23, %24 : vector<16x32xf32>
    %26 = arith.truncf %25 : vector<16x32xf32> to vector<16x32xbf16>
    %27 = vector.shape_cast %26 : vector<16x32xbf16> to vector<2x8x32xbf16>
    %c0_10 = arith.constant 0 : index
    %c0_11 = arith.constant 0 : index
    %c0_12 = arith.constant 0 : index
    %28 = vector.load %arg12[%c0_10, %c0_11, %c0_12] : memref<2x8x32xbf16, #tpu.memory_space<vmem>>, vector<2x8x32xbf16>
    tpu.vector_store %arg12[%c0_10, %c0_11, %c0_12], %27 {strides = array<i32>} : memref<2x8x32xbf16, #tpu.memory_space<vmem>>, vector<2x8x32xbf16>,
    %29 = vector.extract_strided_slice %20 {offsets = [0, 32], sizes = [16, 32], strides = [1, 1]} : vector<16x96xf32> to vector<16x32xf32>
    %30 = vector.broadcast %9 : vector<1x32xf32> to vector<16x32xf32>
    %31 = arith.addf %29, %30 : vector<16x32xf32>
    %32 = arith.truncf %31 : vector<16x32xf32> to vector<16x32xbf16>
    %33 = vector.shape_cast %32 : vector<16x32xbf16> to vector<2x8x32xbf16>
    %c0_13 = arith.constant 0 : index
    %c0_14 = arith.constant 0 : index
    %c0_15 = arith.constant 0 : index
    %34 = vector.load %arg13[%c0_13, %c0_14, %c0_15] : memref<2x8x32xbf16, #tpu.memory_space<vmem>>, vector<2x8x32xbf16>
    tpu.vector_store %arg13[%c0_13, %c0_14, %c0_15], %33 {strides = array<i32>} : memref<2x8x32xbf16, #tpu.memory_space<vmem>>, vector<2x8x32xbf16>,
    %35 = vector.extract_strided_slice %20 {offsets = [0, 64], sizes = [16, 32], strides = [1, 1]} : vector<16x96xf32> to vector<16x32xf32>
    %36 = vector.broadcast %10 : vector<1x32xf32> to vector<16x32xf32>
    %37 = arith.addf %35, %36 : vector<16x32xf32>
    %38 = arith.truncf %37 : vector<16x32xf32> to vector<16x32xbf16>
    %39 = vector.shape_cast %38 : vector<16x32xbf16> to vector<2x8x32xbf16>
    %c0_16 = arith.constant 0 : index
    %c0_17 = arith.constant 0 : index
    %c0_18 = arith.constant 0 : index
    %40 = vector.load %arg14[%c0_16, %c0_17, %c0_18] : memref<2x8x32xbf16, #tpu.memory_space<vmem>>, vector<2x8x32xbf16>
    tpu.vector_store %arg14[%c0_16, %c0_17, %c0_18], %39 {strides = array<i32>} : memref<2x8x32xbf16, #tpu.memory_space<vmem>>, vector<2x8x32xbf16>,
    %c0_19 = arith.constant 0 : index
    %c0_20 = arith.constant 0 : index
    %c0_21 = arith.constant 0 : index
    %41 = vector.load %arg3[%c0_19, %c0_20, %c0_21] : memref<2x1x8xf32, #tpu.memory_space<vmem>>, vector<2x1x8xf32>
    %c0_22 = arith.constant 0 : index
    %c0_23 = arith.constant 0 : index
    %c0_24 = arith.constant 0 : index
    %42 = vector.load %arg12[%c0_22, %c0_23, %c0_24] : memref<2x8x32xbf16, #tpu.memory_space<vmem>>, vector<2x8x8xbf16>
    %c0_25 = arith.constant 0 : index
    %c0_26 = arith.constant 0 : index
    %c0_27 = arith.constant 0 : index
    %43 = vector.load %arg13[%c0_25, %c0_26, %c0_27] : memref<2x8x32xbf16, #tpu.memory_space<vmem>>, vector<2x8x8xbf16>
    %c0_28 = arith.constant 0 : index
    %c0_29 = arith.constant 0 : index
    %c0_30 = arith.constant 0 : index
    %44 = vector.load %arg14[%c0_28, %c0_29, %c0_30] : memref<2x8x32xbf16, #tpu.memory_space<vmem>>, vector<2x8x8xbf16>
    "tpu.trace_start"() <{level = 10 : i32, message = "bqd,bkd->bqk"}> : () -> ()
    %cst_31 = arith.constant dense<0.000000e+00> : vector<2x8x8xf32>
    %45 = tpu.matmul %42, %43, %cst_31 {dimension_numbers = #tpu.dot_dimension_numbers<[2], [2], [1], [1], [0, 0, 0, 1, 1, 1], [0], [0]>} : vector<2x8x8xbf16>, vector<2x8x8xbf16>, vector<2x8x8xf32> -> vector<2x8x8xf32>
    "tpu.trace_stop"() : () -> ()
    %46 = vector.broadcast %41 : vector<2x1x8xf32> to vector<2x8x8xf32>
    %47 = arith.addf %45, %46 : vector<2x8x8xf32>
    %48 = tpu.iota {dimensions = array<i32: 0>} : vector<8x8xi32>
    %49 = tpu.iota {dimensions = array<i32: 1>} : vector<8x8xi32>
    %50 = arith.cmpi sle, %49, %48 : vector<8x8xi32>
    %51 = vector.shape_cast %50 : vector<8x8xi1> to vector<1x8x8xi1>
    %cst_32 = arith.constant -1.000000e+09 : f32
    %52 = vector.shape_cast %51 : vector<1x8x8xi1> to vector<1x8x8xi1>
    %53 = vector.broadcast %52 : vector<1x8x8xi1> to vector<2x8x8xi1>
    %54 = vector.broadcast %cst_32 : f32 to vector<2x8x8xf32>
    %55 = arith.select %53, %47, %54 : vector<2x8x8xi1>, vector<2x8x8xf32>
    %cst_33 = arith.constant dense<0xFF800000> : vector<2x8xf32>
    %56 = vector.multi_reduction <maximumf>, %55, %cst_33 [2] : vector<2x8x8xf32> to vector<2x8xf32>
    %57 = vector.shape_cast %56 : vector<2x8xf32> to vector<2x8x1xf32>
    %58 = vector.broadcast %57 : vector<2x8x1xf32> to vector<2x8x8xf32>
    %59 = arith.subf %55, %58 : vector<2x8x8xf32>
    %60 = math.exp %59 : vector<2x8x8xf32>
    %cst_34 = arith.constant dense<0.000000e+00> : vector<2x8xf32>
    %61 = vector.multi_reduction <add>, %60, %cst_34 [2] : vector<2x8x8xf32> to vector<2x8xf32>
    %62 = vector.shape_cast %61 : vector<2x8xf32> to vector<2x8x1xf32>
    %63 = tpu.reciprocal %62 {approx = true} : vector<2x8x1xf32> -> vector<2x8x1xf32>
    %64 = vector.broadcast %63 : vector<2x8x1xf32> to vector<2x8x8xf32>
    %65 = arith.mulf %60, %64 : vector<2x8x8xf32>
    %66 = arith.truncf %65 : vector<2x8x8xf32> to vector<2x8x8xbf16>
    "tpu.trace_start"() <{level = 10 : i32, message = "bqk,bkd->bqd"}> : () -> ()
    %cst_35 = arith.constant dense<0.000000e+00> : vector<2x8x8xf32>
    %67 = tpu.matmul %66, %44, %cst_35 {dimension_numbers = #tpu.dot_dimension_numbers<[2], [1], [1], [2], [0, 0, 0, 1, 1, 2], [0], [0]>} : vector<2x8x8xbf16>, vector<2x8x8xbf16>, vector<2x8x8xf32> -> vector<2x8x8xf32>
    "tpu.trace_stop"() : () -> ()
    %68 = arith.truncf %67 : vector<2x8x8xf32> to vector<2x8x8xbf16>
    %c0_36 = arith.constant 0 : index
    %c0_37 = arith.constant 0 : index
    %c0_38 = arith.constant 0 : index
    %69 = vector.load %arg15[%c0_36, %c0_37, %c0_38] : memref<2x8x32xbf16, #tpu.memory_space<vmem>>, vector<2x8x8xbf16>
    tpu.vector_store %arg15[%c0_36, %c0_37, %c0_38], %68 {strides = array<i32>} : memref<2x8x32xbf16, #tpu.memory_space<vmem>>, vector<2x8x8xbf16>,
    %c0_39 = arith.constant 0 : index
    %c0_40 = arith.constant 0 : index
    %c8 = arith.constant 8 : index
    %70 = vector.load %arg12[%c0_39, %c0_40, %c8] : memref<2x8x32xbf16, #tpu.memory_space<vmem>>, vector<2x8x8xbf16>
    %c0_41 = arith.constant 0 : index
    %c0_42 = arith.constant 0 : index
    %c8_43 = arith.constant 8 : index
    %71 = vector.load %arg13[%c0_41, %c0_42, %c8_43] : memref<2x8x32xbf16, #tpu.memory_space<vmem>>, vector<2x8x8xbf16>
    %c0_44 = arith.constant 0 : index
    %c0_45 = arith.constant 0 : index
    %c8_46 = arith.constant 8 : index
    %72 = vector.load %arg14[%c0_44, %c0_45, %c8_46] : memref<2x8x32xbf16, #tpu.memory_space<vmem>>, vector<2x8x8xbf16>
    "tpu.trace_start"() <{level = 10 : i32, message = "bqd,bkd->bqk"}> : () -> ()
    %cst_47 = arith.constant dense<0.000000e+00> : vector<2x8x8xf32>
    %73 = tpu.matmul %70, %71, %cst_47 {dimension_numbers = #tpu.dot_dimension_numbers<[2], [2], [1], [1], [0, 0, 0, 1, 1, 1], [0], [0]>} : vector<2x8x8xbf16>, vector<2x8x8xbf16>, vector<2x8x8xf32> -> vector<2x8x8xf32>
    "tpu.trace_stop"() : () -> ()
    %74 = vector.broadcast %41 : vector<2x1x8xf32> to vector<2x8x8xf32>
    %75 = arith.addf %73, %74 : vector<2x8x8xf32>
    %76 = tpu.iota {dimensions = array<i32: 0>} : vector<8x8xi32>
    %77 = tpu.iota {dimensions = array<i32: 1>} : vector<8x8xi32>
    %78 = arith.cmpi sle, %77, %76 : vector<8x8xi32>
    %79 = vector.shape_cast %78 : vector<8x8xi1> to vector<1x8x8xi1>
    %cst_48 = arith.constant -1.000000e+09 : f32
    %80 = vector.shape_cast %79 : vector<1x8x8xi1> to vector<1x8x8xi1>
    %81 = vector.broadcast %80 : vector<1x8x8xi1> to vector<2x8x8xi1>
    %82 = vector.broadcast %cst_48 : f32 to vector<2x8x8xf32>
    %83 = arith.select %81, %75, %82 : vector<2x8x8xi1>, vector<2x8x8xf32>
    %cst_49 = arith.constant dense<0xFF800000> : vector<2x8xf32>
    %84 = vector.multi_reduction <maximumf>, %83, %cst_49 [2] : vector<2x8x8xf32> to vector<2x8xf32>
    %85 = vector.shape_cast %84 : vector<2x8xf32> to vector<2x8x1xf32>
    %86 = vector.broadcast %85 : vector<2x8x1xf32> to vector<2x8x8xf32>
    %87 = arith.subf %83, %86 : vector<2x8x8xf32>
    %88 = math.exp %87 : vector<2x8x8xf32>
    %cst_50 = arith.constant dense<0.000000e+00> : vector<2x8xf32>
    %89 = vector.multi_reduction <add>, %88, %cst_50 [2] : vector<2x8x8xf32> to vector<2x8xf32>
    %90 = vector.shape_cast %89 : vector<2x8xf32> to vector<2x8x1xf32>
    %91 = tpu.reciprocal %90 {approx = true} : vector<2x8x1xf32> -> vector<2x8x1xf32>
    %92 = vector.broadcast %91 : vector<2x8x1xf32> to vector<2x8x8xf32>
    %93 = arith.mulf %88, %92 : vector<2x8x8xf32>
    %94 = arith.truncf %93 : vector<2x8x8xf32> to vector<2x8x8xbf16>
    "tpu.trace_start"() <{level = 10 : i32, message = "bqk,bkd->bqd"}> : () -> ()
    %cst_51 = arith.constant dense<0.000000e+00> : vector<2x8x8xf32>
    %95 = tpu.matmul %94, %72, %cst_51 {dimension_numbers = #tpu.dot_dimension_numbers<[2], [1], [1], [2], [0, 0, 0, 1, 1, 2], [0], [0]>} : vector<2x8x8xbf16>, vector<2x8x8xbf16>, vector<2x8x8xf32> -> vector<2x8x8xf32>
    "tpu.trace_stop"() : () -> ()
    %96 = arith.truncf %95 : vector<2x8x8xf32> to vector<2x8x8xbf16>
    %c0_52 = arith.constant 0 : index
    %c0_53 = arith.constant 0 : index
    %c8_54 = arith.constant 8 : index
    %97 = vector.load %arg15[%c0_52, %c0_53, %c8_54] : memref<2x8x32xbf16, #tpu.memory_space<vmem>>, vector<2x8x8xbf16>
    tpu.vector_store %arg15[%c0_52, %c0_53, %c8_54], %96 {strides = array<i32>} : memref<2x8x32xbf16, #tpu.memory_space<vmem>>, vector<2x8x8xbf16>,
    %c0_55 = arith.constant 0 : index
    %c0_56 = arith.constant 0 : index
    %c16 = arith.constant 16 : index
    %98 = vector.load %arg12[%c0_55, %c0_56, %c16] : memref<2x8x32xbf16, #tpu.memory_space<vmem>>, vector<2x8x8xbf16>
    %c0_57 = arith.constant 0 : index
    %c0_58 = arith.constant 0 : index
    %c16_59 = arith.constant 16 : index
    %99 = vector.load %arg13[%c0_57, %c0_58, %c16_59] : memref<2x8x32xbf16, #tpu.memory_space<vmem>>, vector<2x8x8xbf16>
    %c0_60 = arith.constant 0 : index
    %c0_61 = arith.constant 0 : index
    %c16_62 = arith.constant 16 : index
    %100 = vector.load %arg14[%c0_60, %c0_61, %c16_62] : memref<2x8x32xbf16, #tpu.memory_space<vmem>>, vector<2x8x8xbf16>
    "tpu.trace_start"() <{level = 10 : i32, message = "bqd,bkd->bqk"}> : () -> ()
    %cst_63 = arith.constant dense<0.000000e+00> : vector<2x8x8xf32>
    %101 = tpu.matmul %98, %99, %cst_63 {dimension_numbers = #tpu.dot_dimension_numbers<[2], [2], [1], [1], [0, 0, 0, 1, 1, 1], [0], [0]>} : vector<2x8x8xbf16>, vector<2x8x8xbf16>, vector<2x8x8xf32> -> vector<2x8x8xf32>
    "tpu.trace_stop"() : () -> ()
    %102 = vector.broadcast %41 : vector<2x1x8xf32> to vector<2x8x8xf32>
    %103 = arith.addf %101, %102 : vector<2x8x8xf32>
    %104 = tpu.iota {dimensions = array<i32: 0>} : vector<8x8xi32>
    %105 = tpu.iota {dimensions = array<i32: 1>} : vector<8x8xi32>
    %106 = arith.cmpi sle, %105, %104 : vector<8x8xi32>
    %107 = vector.shape_cast %106 : vector<8x8xi1> to vector<1x8x8xi1>
    %cst_64 = arith.constant -1.000000e+09 : f32
    %108 = vector.shape_cast %107 : vector<1x8x8xi1> to vector<1x8x8xi1>
    %109 = vector.broadcast %108 : vector<1x8x8xi1> to vector<2x8x8xi1>
    %110 = vector.broadcast %cst_64 : f32 to vector<2x8x8xf32>
    %111 = arith.select %109, %103, %110 : vector<2x8x8xi1>, vector<2x8x8xf32>
    %cst_65 = arith.constant dense<0xFF800000> : vector<2x8xf32>
    %112 = vector.multi_reduction <maximumf>, %111, %cst_65 [2] : vector<2x8x8xf32> to vector<2x8xf32>
    %113 = vector.shape_cast %112 : vector<2x8xf32> to vector<2x8x1xf32>
    %114 = vector.broadcast %113 : vector<2x8x1xf32> to vector<2x8x8xf32>
    %115 = arith.subf %111, %114 : vector<2x8x8xf32>
    %116 = math.exp %115 : vector<2x8x8xf32>
    %cst_66 = arith.constant dense<0.000000e+00> : vector<2x8xf32>
    %117 = vector.multi_reduction <add>, %116, %cst_66 [2] : vector<2x8x8xf32> to vector<2x8xf32>
    %118 = vector.shape_cast %117 : vector<2x8xf32> to vector<2x8x1xf32>
    %119 = tpu.reciprocal %118 {approx = true} : vector<2x8x1xf32> -> vector<2x8x1xf32>
    %120 = vector.broadcast %119 : vector<2x8x1xf32> to vector<2x8x8xf32>
    %121 = arith.mulf %116, %120 : vector<2x8x8xf32>
    %122 = arith.truncf %121 : vector<2x8x8xf32> to vector<2x8x8xbf16>
    "tpu.trace_start"() <{level = 10 : i32, message = "bqk,bkd->bqd"}> : () -> ()
    %cst_67 = arith.constant dense<0.000000e+00> : vector<2x8x8xf32>
    %123 = tpu.matmul %122, %100, %cst_67 {dimension_numbers = #tpu.dot_dimension_numbers<[2], [1], [1], [2], [0, 0, 0, 1, 1, 2], [0], [0]>} : vector<2x8x8xbf16>, vector<2x8x8xbf16>, vector<2x8x8xf32> -> vector<2x8x8xf32>
    "tpu.trace_stop"() : () -> ()
    %124 = arith.truncf %123 : vector<2x8x8xf32> to vector<2x8x8xbf16>
    %c0_68 = arith.constant 0 : index
    %c0_69 = arith.constant 0 : index
    %c16_70 = arith.constant 16 : index
    %125 = vector.load %arg15[%c0_68, %c0_69, %c16_70] : memref<2x8x32xbf16, #tpu.memory_space<vmem>>, vector<2x8x8xbf16>
    tpu.vector_store %arg15[%c0_68, %c0_69, %c16_70], %124 {strides = array<i32>} : memref<2x8x32xbf16, #tpu.memory_space<vmem>>, vector<2x8x8xbf16>,
    %c0_71 = arith.constant 0 : index
    %c0_72 = arith.constant 0 : index
    %c24 = arith.constant 24 : index
    %126 = vector.load %arg12[%c0_71, %c0_72, %c24] : memref<2x8x32xbf16, #tpu.memory_space<vmem>>, vector<2x8x8xbf16>
    %c0_73 = arith.constant 0 : index
    %c0_74 = arith.constant 0 : index
    %c24_75 = arith.constant 24 : index
    %127 = vector.load %arg13[%c0_73, %c0_74, %c24_75] : memref<2x8x32xbf16, #tpu.memory_space<vmem>>, vector<2x8x8xbf16>
    %c0_76 = arith.constant 0 : index
    %c0_77 = arith.constant 0 : index
    %c24_78 = arith.constant 24 : index
    %128 = vector.load %arg14[%c0_76, %c0_77, %c24_78] : memref<2x8x32xbf16, #tpu.memory_space<vmem>>, vector<2x8x8xbf16>
    "tpu.trace_start"() <{level = 10 : i32, message = "bqd,bkd->bqk"}> : () -> ()
    %cst_79 = arith.constant dense<0.000000e+00> : vector<2x8x8xf32>
    %129 = tpu.matmul %126, %127, %cst_79 {dimension_numbers = #tpu.dot_dimension_numbers<[2], [2], [1], [1], [0, 0, 0, 1, 1, 1], [0], [0]>} : vector<2x8x8xbf16>, vector<2x8x8xbf16>, vector<2x8x8xf32> -> vector<2x8x8xf32>
    "tpu.trace_stop"() : () -> ()
    %130 = vector.broadcast %41 : vector<2x1x8xf32> to vector<2x8x8xf32>
    %131 = arith.addf %129, %130 : vector<2x8x8xf32>
    %132 = tpu.iota {dimensions = array<i32: 0>} : vector<8x8xi32>
    %133 = tpu.iota {dimensions = array<i32: 1>} : vector<8x8xi32>
    %134 = arith.cmpi sle, %133, %132 : vector<8x8xi32>
    %135 = vector.shape_cast %134 : vector<8x8xi1> to vector<1x8x8xi1>
    %cst_80 = arith.constant -1.000000e+09 : f32
    %136 = vector.shape_cast %135 : vector<1x8x8xi1> to vector<1x8x8xi1>
    %137 = vector.broadcast %136 : vector<1x8x8xi1> to vector<2x8x8xi1>
    %138 = vector.broadcast %cst_80 : f32 to vector<2x8x8xf32>
    %139 = arith.select %137, %131, %138 : vector<2x8x8xi1>, vector<2x8x8xf32>
    %cst_81 = arith.constant dense<0xFF800000> : vector<2x8xf32>
    %140 = vector.multi_reduction <maximumf>, %139, %cst_81 [2] : vector<2x8x8xf32> to vector<2x8xf32>
    %141 = vector.shape_cast %140 : vector<2x8xf32> to vector<2x8x1xf32>
    %142 = vector.broadcast %141 : vector<2x8x1xf32> to vector<2x8x8xf32>
    %143 = arith.subf %139, %142 : vector<2x8x8xf32>
    %144 = math.exp %143 : vector<2x8x8xf32>
    %cst_82 = arith.constant dense<0.000000e+00> : vector<2x8xf32>
    %145 = vector.multi_reduction <add>, %144, %cst_82 [2] : vector<2x8x8xf32> to vector<2x8xf32>
    %146 = vector.shape_cast %145 : vector<2x8xf32> to vector<2x8x1xf32>
    %147 = tpu.reciprocal %146 {approx = true} : vector<2x8x1xf32> -> vector<2x8x1xf32>
    %148 = vector.broadcast %147 : vector<2x8x1xf32> to vector<2x8x8xf32>
    %149 = arith.mulf %144, %148 : vector<2x8x8xf32>
    %150 = arith.truncf %149 : vector<2x8x8xf32> to vector<2x8x8xbf16>
    "tpu.trace_start"() <{level = 10 : i32, message = "bqk,bkd->bqd"}> : () -> ()
    %cst_83 = arith.constant dense<0.000000e+00> : vector<2x8x8xf32>
    %151 = tpu.matmul %150, %128, %cst_83 {dimension_numbers = #tpu.dot_dimension_numbers<[2], [1], [1], [2], [0, 0, 0, 1, 1, 2], [0], [0]>} : vector<2x8x8xbf16>, vector<2x8x8xbf16>, vector<2x8x8xf32> -> vector<2x8x8xf32>
    "tpu.trace_stop"() : () -> ()
    %152 = arith.truncf %151 : vector<2x8x8xf32> to vector<2x8x8xbf16>
    %c0_84 = arith.constant 0 : index
    %c0_85 = arith.constant 0 : index
    %c24_86 = arith.constant 24 : index
    %153 = vector.load %arg15[%c0_84, %c0_85, %c24_86] : memref<2x8x32xbf16, #tpu.memory_space<vmem>>, vector<2x8x8xbf16>
    tpu.vector_store %arg15[%c0_84, %c0_85, %c24_86], %152 {strides = array<i32>} : memref<2x8x32xbf16, #tpu.memory_space<vmem>>, vector<2x8x8xbf16>,
    %c0_87 = arith.constant 0 : index
    %c0_88 = arith.constant 0 : index
    %c0_89 = arith.constant 0 : index
    %154 = vector.load %arg15[%c0_87, %c0_88, %c0_89] : memref<2x8x32xbf16, #tpu.memory_space<vmem>>, vector<2x8x32xbf16>
    %155 = vector.shape_cast %154 : vector<2x8x32xbf16> to vector<16x32xbf16>
    %c0_90 = arith.constant 0 : index
    %c0_91 = arith.constant 0 : index
    %c0_92 = arith.constant 0 : index
    %156 = vector.load %arg7[%c0_90, %c0_91, %c0_92] : memref<1x32x32xbf16, #tpu.memory_space<vmem>>, vector<1x32x32xbf16>
    %157 = vector.shape_cast %156 : vector<1x32x32xbf16> to vector<32x32xbf16>
    %cst_93 = arith.constant dense<0.000000e+00> : vector<16x32xf32>
    %158 = tpu.matmul %155, %157, %cst_93 {dimension_numbers = #tpu.dot_dimension_numbers<[1], [0], [0], [1], [0, 0, 1, 1], [], []>} : vector<16x32xbf16>, vector<32x32xbf16>, vector<16x32xf32> -> vector<16x32xf32>
    %159 = vector.broadcast %11 : vector<1x32xf32> to vector<16x32xf32>
    %160 = arith.addf %158, %159 : vector<16x32xf32>
    %161 = arith.addf %4, %160 : vector<16x32xf32>
    %cst_94 = arith.constant dense<0.000000e+00> : vector<16xf32>
    %162 = vector.multi_reduction <add>, %161, %cst_94 [1] : vector<16x32xf32> to vector<16xf32>
    %163 = vector.shape_cast %162 : vector<16xf32> to vector<16x1xf32>
    %cst_95 = arith.constant 3.200000e+01 : f32
    %164 = vector.broadcast %cst_95 : f32 to vector<16x1xf32>
    %165 = arith.divf %163, %164 : vector<16x1xf32>
    %166 = vector.broadcast %165 : vector<16x1xf32> to vector<16x32xf32>
    %167 = arith.subf %161, %166 : vector<16x32xf32>
    %168 = arith.mulf %167, %167 : vector<16x32xf32>
    %cst_96 = arith.constant dense<0.000000e+00> : vector<16xf32>
    %169 = vector.multi_reduction <add>, %168, %cst_96 [1] : vector<16x32xf32> to vector<16xf32>
    %170 = vector.shape_cast %169 : vector<16xf32> to vector<16x1xf32>
    %cst_97 = arith.constant 3.200000e+01 : f32
    %171 = vector.broadcast %cst_97 : f32 to vector<16x1xf32>
    %172 = arith.divf %170, %171 : vector<16x1xf32>
    %173 = vector.broadcast %165 : vector<16x1xf32> to vector<16x32xf32>
    %174 = arith.subf %161, %173 : vector<16x32xf32>
    %cst_98 = arith.constant 9.99999974E-6 : f32
    %175 = vector.broadcast %cst_98 : f32 to vector<16x1xf32>
    %176 = arith.addf %172, %175 : vector<16x1xf32>
    %177 = math.rsqrt %176 : vector<16x1xf32>
    %178 = vector.broadcast %177 : vector<16x1xf32> to vector<16x32xf32>
    %179 = arith.mulf %174, %178 : vector<16x32xf32>
    %180 = vector.broadcast %12 : vector<1x32xf32> to vector<16x32xf32>
    %181 = arith.mulf %179, %180 : vector<16x32xf32>
    %182 = vector.broadcast %13 : vector<1x32xf32> to vector<16x32xf32>
    %183 = arith.addf %181, %182 : vector<16x32xf32>
    %184 = arith.truncf %183 : vector<16x32xf32> to vector<16x32xbf16>
    %c0_99 = arith.constant 0 : index
    %c0_100 = arith.constant 0 : index
    %c0_101 = arith.constant 0 : index
    %185 = vector.load %arg8[%c0_99, %c0_100, %c0_101] : memref<1x32x64xbf16, #tpu.memory_space<vmem>>, vector<1x32x64xbf16>
    %186 = vector.shape_cast %185 : vector<1x32x64xbf16> to vector<32x64xbf16>
    %cst_102 = arith.constant dense<0.000000e+00> : vector<16x64xf32>
    %187 = tpu.matmul %184, %186, %cst_102 {dimension_numbers = #tpu.dot_dimension_numbers<[1], [0], [0], [1], [0, 0, 1, 1], [], []>} : vector<16x32xbf16>, vector<32x64xbf16>, vector<16x64xf32> -> vector<16x64xf32>
    %188 = vector.broadcast %16 : vector<1x64xf32> to vector<16x64xf32>
    %189 = arith.addf %187, %188 : vector<16x64xf32>
    %cst_103 = arith.constant 0.000000e+00 : f32
    %190 = vector.broadcast %cst_103 : f32 to vector<16x64xf32>
    %191 = arith.maximumf %189, %190 : vector<16x64xf32>
    %192 = arith.truncf %191 : vector<16x64xf32> to vector<16x64xbf16>
    %c0_104 = arith.constant 0 : index
    %c0_105 = arith.constant 0 : index
    %c0_106 = arith.constant 0 : index
    %193 = vector.load %arg9[%c0_104, %c0_105, %c0_106] : memref<1x64x32xbf16, #tpu.memory_space<vmem>>, vector<1x64x32xbf16>
    %194 = vector.shape_cast %193 : vector<1x64x32xbf16> to vector<64x32xbf16>
    %cst_107 = arith.constant dense<0.000000e+00> : vector<16x32xf32>
    %195 = tpu.matmul %192, %194, %cst_107 {dimension_numbers = #tpu.dot_dimension_numbers<[1], [0], [0], [1], [0, 0, 1, 1], [], []>} : vector<16x64xbf16>, vector<64x32xbf16>, vector<16x32xf32> -> vector<16x32xf32>
    %196 = vector.broadcast %17 : vector<1x32xf32> to vector<16x32xf32>
    %197 = arith.addf %195, %196 : vector<16x32xf32>
    %198 = arith.addf %183, %197 : vector<16x32xf32>
    %cst_108 = arith.constant dense<0.000000e+00> : vector<16xf32>
    %199 = vector.multi_reduction <add>, %198, %cst_108 [1] : vector<16x32xf32> to vector<16xf32>
    %200 = vector.shape_cast %199 : vector<16xf32> to vector<16x1xf32>
    %cst_109 = arith.constant 3.200000e+01 : f32
    %201 = vector.broadcast %cst_109 : f32 to vector<16x1xf32>
    %202 = arith.divf %200, %201 : vector<16x1xf32>
    %203 = vector.broadcast %202 : vector<16x1xf32> to vector<16x32xf32>
    %204 = arith.subf %198, %203 : vector<16x32xf32>
    %205 = arith.mulf %204, %204 : vector<16x32xf32>
    %cst_110 = arith.constant dense<0.000000e+00> : vector<16xf32>
    %206 = vector.multi_reduction <add>, %205, %cst_110 [1] : vector<16x32xf32> to vector<16xf32>
    %207 = vector.shape_cast %206 : vector<16xf32> to vector<16x1xf32>
    %cst_111 = arith.constant 3.200000e+01 : f32
    %208 = vector.broadcast %cst_111 : f32 to vector<16x1xf32>
    %209 = arith.divf %207, %208 : vector<16x1xf32>
    %210 = vector.broadcast %202 : vector<16x1xf32> to vector<16x32xf32>
    %211 = arith.subf %198, %210 : vector<16x32xf32>
    %cst_112 = arith.constant 9.99999974E-6 : f32
    %212 = vector.broadcast %cst_112 : f32 to vector<16x1xf32>
    %213 = arith.addf %209, %212 : vector<16x1xf32>
    %214 = math.rsqrt %213 : vector<16x1xf32>
    %215 = vector.broadcast %214 : vector<16x1xf32> to vector<16x32xf32>
    %216 = arith.mulf %211, %215 : vector<16x32xf32>
    %217 = vector.broadcast %14 : vector<1x32xf32> to vector<16x32xf32>
    %218 = arith.mulf %216, %217 : vector<16x32xf32>
    %219 = vector.broadcast %15 : vector<1x32xf32> to vector<16x32xf32>
    %220 = arith.addf %218, %219 : vector<16x32xf32>
    %221 = vector.shape_cast %220 : vector<16x32xf32> to vector<2x8x32xf32>
    %c0_113 = arith.constant 0 : index
    %c0_114 = arith.constant 0 : index
    %c0_115 = arith.constant 0 : index
    %222 = vector.load %arg11[%c0_113, %c0_114, %c0_115] : memref<2x8x32xf32, #tpu.memory_space<vmem>>, vector<2x8x32xf32>
    tpu.vector_store %arg11[%c0_113, %c0_114, %c0_115], %221 {strides = array<i32>} : memref<2x8x32xf32, #tpu.memory_space<vmem>>, vector<2x8x32xf32>,
    return
  }
  func.func @transform_0(%arg0: i32, %arg1: i32) -> (i32, i32, i32) {
    %c0_i32 = arith.constant 0 : i32
    %c0_i32_0 = arith.constant 0 : i32
    %c0_i32_1 = arith.constant 0 : i32
    return %arg0, %c0_i32, %c0_i32_0 : i32, i32, i32
  }
  func.func @transform_1(%arg0: i32, %arg1: i32) -> (i32, i32, i32) {
    %c0_i32 = arith.constant 0 : i32
    %c0_i32_0 = arith.constant 0 : i32
    %c0_i32_1 = arith.constant 0 : i32
    return %arg0, %c0_i32, %c0_i32_0 : i32, i32, i32
  }
  func.func @transform_2(%arg0: i32, %arg1: i32) -> (i32, i32) {
    %c0_i32 = arith.constant 0 : i32
    %c0_i32_0 = arith.constant 0 : i32
    %c0_i32_1 = arith.constant 0 : i32
    return %c0_i32, %c0_i32_0 : i32, i32
  }
  func.func @transform_3(%arg0: i32, %arg1: i32) -> (i32, i32) {
    %c0_i32 = arith.constant 0 : i32
    %c0_i32_0 = arith.constant 0 : i32
    %c0_i32_1 = arith.constant 0 : i32
    return %c0_i32, %c0_i32_0 : i32, i32
  }
  func.func @transform_4(%arg0: i32, %arg1: i32) -> (i32, i32, i32) {
    %c0_i32 = arith.constant 0 : i32
    %c0_i32_0 = arith.constant 0 : i32
    %c0_i32_1 = arith.constant 0 : i32
    return %arg1, %c0_i32, %c0_i32_0 : i32, i32, i32
  }
  func.func @transform_5(%arg0: i32, %arg1: i32) -> (i32, i32, i32) {
    %c0_i32 = arith.constant 0 : i32
    %c0_i32_0 = arith.constant 0 : i32
    %c0_i32_1 = arith.constant 0 : i32
    return %arg1, %c0_i32, %c0_i32_0 : i32, i32, i32
  }
  func.func @transform_6(%arg0: i32, %arg1: i32) -> (i32, i32, i32) {
    %c0_i32 = arith.constant 0 : i32
    %c0_i32_0 = arith.constant 0 : i32
    %c0_i32_1 = arith.constant 0 : i32
    return %arg1, %c0_i32, %c0_i32_0 : i32, i32, i32
  }
  func.func @transform_7(%arg0: i32, %arg1: i32) -> (i32, i32, i32) {
    %c0_i32 = arith.constant 0 : i32
    %c0_i32_0 = arith.constant 0 : i32
    %c0_i32_1 = arith.constant 0 : i32
    return %arg1, %c0_i32, %c0_i32_0 : i32, i32, i32
  }
  func.func @transform_8(%arg0: i32, %arg1: i32) -> (i32, i32, i32) {
    %c0_i32 = arith.constant 0 : i32
    %c0_i32_0 = arith.constant 0 : i32
    %c0_i32_1 = arith.constant 0 : i32
    return %arg1, %c0_i32, %c0_i32_0 : i32, i32, i32
  }
  func.func @transform_9(%arg0: i32, %arg1: i32) -> (i32, i32, i32) {
    %c0_i32 = arith.constant 0 : i32
    %c0_i32_0 = arith.constant 0 : i32
    %c0_i32_1 = arith.constant 0 : i32
    return %arg0, %c0_i32, %c0_i32_0 : i32, i32, i32
  }
}

</mosaic_0001>

<llo_original>
// kernel: tpu_custom_call.1
$region0: #{tpu_custom_call.1}
  #allocation0 [shape = 'u32[]', space=smem, size = 0x4, offset = 0x4, fixed_abs, tag = 'smem constant byte address 0x4 - core index']
  #allocation1 [shape = 'u32[144,128]{1,0:T(1,128)}', space=vmem, size = 0x12000, scoped, tag = 'internal scratch']
  #allocation2 [shape = 'bf16[2,8,32]{2,1,0:T(8,128)(2,1)}', space=vmem, size = 0x1000, scoped, tag = 'scratch operand']
  #allocation3 [shape = 'bf16[2,8,32]{2,1,0:T(8,128)(2,1)}', space=vmem, size = 0x1000, scoped, tag = 'scratch operand']
  #allocation4 [shape = 'bf16[2,8,32]{2,1,0:T(8,128)(2,1)}', space=vmem, size = 0x1000, scoped, tag = 'scratch operand']
  #allocation5 [shape = 'bf16[2,8,32]{2,1,0:T(8,128)(2,1)}', space=vmem, size = 0x1000, scoped, tag = 'scratch operand']
  %s0 = inlined_call_operand.hbm [shape: f32[2,8,32], index: 0, kind: input, shape index: {}]
  %s1 = inlined_call_operand.hbm [shape: f32[2,1,8], index: 1, kind: input, shape index: {}]
  %s2 = inlined_call_operand.hbm [shape: f32[1,32], index: 2, kind: input, shape index: {}]
  %s3 = inlined_call_operand.hbm [shape: f32[1,32], index: 3, kind: input, shape index: {}]
  %s4 = inlined_call_operand.hbm [shape: bf16[2,32,96], index: 4, kind: input, shape index: {}]
  %s5 = inlined_call_operand.hbm [shape: bf16[2,32,32], index: 5, kind: input, shape index: {}]
  %s6 = inlined_call_operand.hbm [shape: bf16[2,32,64], index: 6, kind: input, shape index: {}]
  %s7 = inlined_call_operand.hbm [shape: bf16[2,64,32], index: 7, kind: input, shape index: {}]
  %s8 = inlined_call_operand.hbm [shape: f32[2,16,64], index: 8, kind: input, shape index: {}]
  %s9 = inlined_call_operand.hbm [shape: f32[2,8,32], index: 9, kind: output, shape index: {}]
  %s10 = sld [smem:[#allocation0]]
  $region109: #{tpu_custom_call.1} parent=0
    _
  %s12 = ssub.s32 1, %s10
  %s13 = scalar_select 0, %s12, %s10
  $region1: #{tpu_custom_call.1} parent=0
    #allocation6 [shape = 'u8[8192]{0}', space=vmem, size = 0x2000, scoped, tag = 'input window, operand 0, single buffered']
    #allocation7 [shape = 's32[2]{0}', space=sflag, size = 0x8, scoped, tag = 'scoped memory for tpu_custom_call.1']
    #allocation8 [shape = 's32[2]{0}', space=sflag, size = 0x8, scoped, tag = 'scoped memory for tpu_custom_call.1']
    #allocation9 [shape = 'u8[1024]{0}', space=vmem, size = 0x400, scoped, tag = 'input window, operand 1, single buffered']
    #allocation10 [shape = 's32[1]{0}', space=sflag, size = 0x4, scoped, tag = 'scoped memory for tpu_custom_call.1']
    #allocation11 [shape = 'u8[512]{0}', space=vmem, size = 0x400, scoped, tag = 'input window, operand 2, single buffered']
    #allocation12 [shape = 'u8[512]{0}', space=vmem, size = 0x400, scoped, tag = 'input window, operand 3, single buffered']
    #allocation13 [shape = 's32[1]{0}', space=sflag, size = 0x4, scoped, tag = 'scoped memory for tpu_custom_call.1']
    #allocation14 [shape = 'u8[16384]{0}', space=vmem, size = 0x4000, scoped, tag = 'input window, operand 4']
    #allocation15 [shape = 'u8[16384]{0}', space=vmem, size = 0x4000, scoped, tag = 'input window, operand 5']
    #allocation16 [shape = 'u8[16384]{0}', space=vmem, size = 0x4000, scoped, tag = 'input window, operand 6']
    #allocation17 [shape = 'u8[32768]{0}', space=vmem, size = 0x8000, scoped, tag = 'input window, operand 7']
    #allocation18 [shape = 'u8[16384]{0}', space=vmem, size = 0x4000, scoped, tag = 'input window, operand 8']
    #allocation19 [shape = 'u8[8192]{0}', space=vmem, size = 0x2000, scoped, tag = 'output window, operand 0, single buffered']
    %14 = vsyncpa [#allocation7], 0
    %15 = vsyncpa [#allocation10], 0
    %16 = vsyncpa [#allocation13], 0
    %17 = vsyncpa [#allocation8], 0
    loop: start=0, step=1, limit=4
    $region2: #{tpu_custom_call.1} parent=1 // loop_pre_header
      _
    $region3: #{tpu_custom_call.1} parent=1 // loop_header
      %s19 = sphi 0, %s23
      %p20 = scmp.ge.s32.totalorder %s19, 4
      %s26 = sphi 0, %s38
      %s27 = sphi 0, %s34
      %s28 = sphi 0, %s26
      %s29 = sphi 0, %s27
      %s30 = sphi 0, %s28
      %s31 = sphi 0, %s29
      %s41 = sphi 0, %s43
      %s44 = sphi 0, %s41
      %s45 = sphi 0, %s44
      %s61 = sphi 0, %s45
      %s67 = sphi 0, %s69
      %s70 = sphi 0, %s67
      %s71 = sphi 0, %s70
      %s87 = sphi 0, %s71
      %s91 = sphi 0, %s91
      %s93 = sphi 0, %s91
      %s94 = sphi 0, %s93
      %s108 = sphi 0, %s94
      %s112 = sphi 0, %s112
      %s114 = sphi 0, %s112
      %s115 = sphi 0, %s114
      %s129 = sphi 0, %s115
      %s135 = sphi 0, %s137
      %s138 = sphi 0, %s135
      %s139 = sphi 0, %s138
      %s155 = sphi 0, %s139
      %s161 = sphi 0, %s163
      %s164 = sphi 0, %s161
      %s165 = sphi 0, %s164
      %s181 = sphi 0, %s165
      %s187 = sphi 0, %s189
      %s190 = sphi 0, %s187
      %s191 = sphi 0, %s190
      %s207 = sphi 0, %s191
      %s213 = sphi 0, %s215
      %s216 = sphi 0, %s213
      %s217 = sphi 0, %s216
      %s233 = sphi 0, %s217
      %s239 = sphi 0, %s241
      %s242 = sphi 0, %s239
      %s243 = sphi 0, %s242
      %s259 = sphi 0, %s243
      %s265 = sphi 0, %s267
      %s268 = sphi 0, %s265
      %s269 = sphi 0, %s268
      %s285 = sphi 0, %s269
    $region4: #{tpu_custom_call.1} parent=1 // loop_header_branch
      %22 = sbr.rel (%p20) target = $region8
    $region5: #{tpu_custom_call.1} parent=1 // loop_body
      %s24 = ssub.s32 %s19, 1
      %s25 = ssub.s32 %s19, 2
      %s32 = sadd.s32 1, %s27
      %p33 = scmp.ge.s32.totalorder %s32, 2
      %s34 = scalar_select %p33, 0, %s32
      %s35 = sadd.s32 1, %s26
      %s36 = scalar_select %p33, %s35, %s26
      %p37 = scmp.ge.s32.totalorder %s36, 1
      %s38 = scalar_select %p37, 0, %s36
      %s39 = ssub.s32 %s26, %s38
      %p40 = scmp.eq.s32.totalorder %s39, 0
      %s42 = sadd.s32 %s41, 1
      %s43 = scalar_select %p40, %s41, %s42
      %p46 = pneg %p40
      %p47 = scmp.eq.s32.totalorder %s19, 1
      %p48 = por %p46, %p47
      %p49 = scmp.ne.s32.totalorder %s41, %s44
      %p50 = scmp.eq.s32.totalorder %s19, 0
      %p51 = por %p49, %p50
      %p52 = scmp.ne.s32.totalorder %s41, %s44
      %p53 = scmp.eq.s32.totalorder %s24, 1
      %p54 = por %p52, %p53
      %p55 = scmp.ne.s32.totalorder %s44, %s45
      %p56 = scmp.eq.s32.totalorder %s24, 0
      %p57 = por %p55, %p56
      %p58 = scmp.ne.s32.totalorder %s44, %s45
      %p59 = scmp.eq.s32.totalorder %s25, 1
      %p60 = por %p58, %p59
      %p62 = scmp.ne.s32.totalorder %s45, %s61
      %p63 = scmp.eq.s32.totalorder %s25, 0
      %p64 = por %p62, %p63
      %s65 = ssub.s32 %s26, %s38
      %p66 = scmp.eq.s32.totalorder %s65, 0
      %s68 = sadd.s32 %s67, 1
      %s69 = scalar_select %p66, %s67, %s68
      %p72 = pneg %p66
      %p73 = scmp.eq.s32.totalorder %s19, 1
      %p74 = por %p72, %p73
      %p75 = scmp.ne.s32.totalorder %s67, %s70
      %p76 = scmp.eq.s32.totalorder %s19, 0
      %p77 = por %p75, %p76
      %p78 = scmp.ne.s32.totalorder %s67, %s70
      %p79 = scmp.eq.s32.totalorder %s24, 1
      %p80 = por %p78, %p79
      %p81 = scmp.ne.s32.totalorder %s70, %s71
      %p82 = scmp.eq.s32.totalorder %s24, 0
      %p83 = por %p81, %p82
      %p84 = scmp.ne.s32.totalorder %s70, %s71
      %p85 = scmp.eq.s32.totalorder %s25, 1
      %p86 = por %p84, %p85
      %p88 = scmp.ne.s32.totalorder %s71, %s87
      %p89 = scmp.eq.s32.totalorder %s25, 0
      %p90 = por %p88, %p89
      %s92 = sadd.s32 %s91, 1
      %p95 = scmp.eq.s32.totalorder %s19, 1
      %p96 = scmp.ne.s32.totalorder %s91, %s93
      %p97 = scmp.eq.s32.totalorder %s19, 0
      %p98 = por %p96, %p97
      %p99 = scmp.ne.s32.totalorder %s91, %s93
      %p100 = scmp.eq.s32.totalorder %s24, 1
      %p101 = por %p99, %p100
      %p102 = scmp.ne.s32.totalorder %s93, %s94
      %p103 = scmp.eq.s32.totalorder %s24, 0
      %p104 = por %p102, %p103
      %p105 = scmp.ne.s32.totalorder %s93, %s94
      %p106 = scmp.eq.s32.totalorder %s25, 1
      %p107 = por %p105, %p106
      %p109 = scmp.ne.s32.totalorder %s94, %s108
      %p110 = scmp.eq.s32.totalorder %s25, 0
      %p111 = por %p109, %p110
      %s113 = sadd.s32 %s112, 1
      %p116 = scmp.eq.s32.totalorder %s19, 1
      %p117 = scmp.ne.s32.totalorder %s112, %s114
      %p118 = scmp.eq.s32.totalorder %s19, 0
      %p119 = por %p117, %p118
      %p120 = scmp.ne.s32.totalorder %s112, %s114
      %p121 = scmp.eq.s32.totalorder %s24, 1
      %p122 = por %p120, %p121
      %p123 = scmp.ne.s32.totalorder %s114, %s115
      %p124 = scmp.eq.s32.totalorder %s24, 0
      %p125 = por %p123, %p124
      %p126 = scmp.ne.s32.totalorder %s114, %s115
      %p127 = scmp.eq.s32.totalorder %s25, 1
      %p128 = por %p126, %p127
      %p130 = scmp.ne.s32.totalorder %s115, %s129
      %p131 = scmp.eq.s32.totalorder %s25, 0
      %p132 = por %p130, %p131
      %s133 = ssub.s32 %s27, %s34
      %p134 = scmp.eq.s32.totalorder %s133, 0
      %s136 = sadd.s32 %s135, 1
      %s137 = scalar_select %p134, %s135, %s136
      %p140 = pneg %p134
      %p141 = scmp.eq.s32.totalorder %s19, 1
      %p142 = por %p140, %p141
      %p143 = scmp.ne.s32.totalorder %s135, %s138
      %p144 = scmp.eq.s32.totalorder %s19, 0
      %p145 = por %p143, %p144
      %p146 = scmp.ne.s32.totalorder %s135, %s138
      %p147 = scmp.eq.s32.totalorder %s24, 1
      %p148 = por %p146, %p147
      %p149 = scmp.ne.s32.totalorder %s138, %s139
      %p150 = scmp.eq.s32.totalorder %s24, 0
      %p151 = por %p149, %p150
      %p152 = scmp.ne.s32.totalorder %s138, %s139
      %p153 = scmp.eq.s32.totalorder %s25, 1
      %p154 = por %p152, %p153
      %p156 = scmp.ne.s32.totalorder %s139, %s155
      %p157 = scmp.eq.s32.totalorder %s25, 0
      %p158 = por %p156, %p157
      %s159 = ssub.s32 %s27, %s34
      %p160 = scmp.eq.s32.totalorder %s159, 0
      %s162 = sadd.s32 %s161, 1
      %s163 = scalar_select %p160, %s161, %s162
      %p166 = pneg %p160
      %p167 = scmp.eq.s32.totalorder %s19, 1
      %p168 = por %p166, %p167
      %p169 = scmp.ne.s32.totalorder %s161, %s164
      %p170 = scmp.eq.s32.totalorder %s19, 0
      %p171 = por %p169, %p170
      %p172 = scmp.ne.s32.totalorder %s161, %s164
      %p173 = scmp.eq.s32.totalorder %s24, 1
      %p174 = por %p172, %p173
      %p175 = scmp.ne.s32.totalorder %s164, %s165
      %p176 = scmp.eq.s32.totalorder %s24, 0
      %p177 = por %p175, %p176
      %p178 = scmp.ne.s32.totalorder %s164, %s165
      %p179 = scmp.eq.s32.totalorder %s25, 1
      %p180 = por %p178, %p179
      %p182 = scmp.ne.s32.totalorder %s165, %s181
      %p183 = scmp.eq.s32.totalorder %s25, 0
      %p184 = por %p182, %p183
      %s185 = ssub.s32 %s27, %s34
      %p186 = scmp.eq.s32.totalorder %s185, 0
      %s188 = sadd.s32 %s187, 1
      %s189 = scalar_select %p186, %s187, %s188
      %p192 = pneg %p186
      %p193 = scmp.eq.s32.totalorder %s19, 1
      %p194 = por %p192, %p193
      %p195 = scmp.ne.s32.totalorder %s187, %s190
      %p196 = scmp.eq.s32.totalorder %s19, 0
      %p197 = por %p195, %p196
      %p198 = scmp.ne.s32.totalorder %s187, %s190
      %p199 = scmp.eq.s32.totalorder %s24, 1
      %p200 = por %p198, %p199
      %p201 = scmp.ne.s32.totalorder %s190, %s191
      %p202 = scmp.eq.s32.totalorder %s24, 0
      %p203 = por %p201, %p202
      %p204 = scmp.ne.s32.totalorder %s190, %s191
      %p205 = scmp.eq.s32.totalorder %s25, 1
      %p206 = por %p204, %p205
      %p208 = scmp.ne.s32.totalorder %s191, %s207
      %p209 = scmp.eq.s32.totalorder %s25, 0
      %p210 = por %p208, %p209
      %s211 = ssub.s32 %s27, %s34
      %p212 = scmp.eq.s32.totalorder %s211, 0
      %s214 = sadd.s32 %s213, 1
      %s215 = scalar_select %p212, %s213, %s214
      %p218 = pneg %p212
      %p219 = scmp.eq.s32.totalorder %s19, 1
      %p220 = por %p218, %p219
      %p221 = scmp.ne.s32.totalorder %s213, %s216
      %p222 = scmp.eq.s32.totalorder %s19, 0
      %p223 = por %p221, %p222
      %p224 = scmp.ne.s32.totalorder %s213, %s216
      %p225 = scmp.eq.s32.totalorder %s24, 1
      %p226 = por %p224, %p225
      %p227 = scmp.ne.s32.totalorder %s216, %s217
      %p228 = scmp.eq.s32.totalorder %s24, 0
      %p229 = por %p227, %p228
      %p230 = scmp.ne.s32.totalorder %s216, %s217
      %p231 = scmp.eq.s32.totalorder %s25, 1
      %p232 = por %p230, %p231
      %p234 = scmp.ne.s32.totalorder %s217, %s233
      %p235 = scmp.eq.s32.totalorder %s25, 0
      %p236 = por %p234, %p235
      %s237 = ssub.s32 %s27, %s34
      %p238 = scmp.eq.s32.totalorder %s237, 0
      %s240 = sadd.s32 %s239, 1
      %s241 = scalar_select %p238, %s239, %s240
      %p244 = pneg %p238
      %p245 = scmp.eq.s32.totalorder %s19, 1
      %p246 = por %p244, %p245
      %p247 = scmp.ne.s32.totalorder %s239, %s242
      %p248 = scmp.eq.s32.totalorder %s19, 0
      %p249 = por %p247, %p248
      %p250 = scmp.ne.s32.totalorder %s239, %s242
      %p251 = scmp.eq.s32.totalorder %s24, 1
      %p252 = por %p250, %p251
      %p253 = scmp.ne.s32.totalorder %s242, %s243
      %p254 = scmp.eq.s32.totalorder %s24, 0
      %p255 = por %p253, %p254
      %p256 = scmp.ne.s32.totalorder %s242, %s243
      %p257 = scmp.eq.s32.totalorder %s25, 1
      %p258 = por %p256, %p257
      %p260 = scmp.ne.s32.totalorder %s243, %s259
      %p261 = scmp.eq.s32.totalorder %s25, 0
      %p262 = por %p260, %p261
      %s263 = ssub.s32 %s26, %s38
      %p264 = scmp.eq.s32.totalorder %s263, 0
      %s266 = sadd.s32 %s265, 1
      %s267 = scalar_select %p264, %s265, %s266
      %p270 = pneg %p264
      %p271 = scmp.eq.s32.totalorder %s19, 1
      %p272 = por %p270, %p271
      %p273 = scmp.ne.s32.totalorder %s265, %s268
      %p274 = scmp.eq.s32.totalorder %s19, 0
      %p275 = por %p273, %p274
      %p276 = scmp.ne.s32.totalorder %s265, %s268
      %p277 = scmp.eq.s32.totalorder %s24, 1
      %p278 = por %p276, %p277
      %p279 = scmp.ne.s32.totalorder %s268, %s269
      %p280 = scmp.eq.s32.totalorder %s24, 0
      %p281 = por %p279, %p280
      %p282 = scmp.ne.s32.totalorder %s268, %s269
      %p283 = scmp.eq.s32.totalorder %s25, 1
      %p284 = por %p282, %p283
      %p286 = scmp.ne.s32.totalorder %s269, %s285
      %p287 = scmp.eq.s32.totalorder %s25, 0
      %p288 = por %p286, %p287
      %p289 = scmp.le.s32.totalorder 1, %s19
      %p290 = scmp.lt.s32.totalorder %s19, 3
      %p291 = pnand %p289, %p290
      %p292 = pneg %p291
      // Predicated region
      $region9: #{tpu_custom_call.1} parent=5 // pred_check
        _
      $region10: #{tpu_custom_call.1} parent=5 // pred_check_branch
        %294 = sbr.rel (%p291) target = $region12
      $region11: #{tpu_custom_call.1} parent=5 // pred_region
        %s295 = ssub.s32 %s19, 1
        // Predicated region
        $region13: #{tpu_custom_call.1} parent=11 // pred_check
          %p296 = pneg %p57
        $region14: #{tpu_custom_call.1} parent=11 // pred_check_branch
          %298 = sbr.rel (%p296) target = $region16
        $region15: #{tpu_custom_call.1} parent=11 // pred_region
          %s299 = smul.u32 2, %s28
          %s301 = ssub.s32 256, 256
          %302 = vsyncadd [#allocation7], %s301
          %s303 = smul.addr %s299, 128
          %s304 = scalar_lea.hbm %s0, %s303
          %s305 = sshll.u32 [#allocation6], 4
          %s306 = int_to_ptr.vmem [resolvable:$true] %s305
          %311 = dma.hbm_to_vmem [thread:$0]  %s304, 256, %s306, [#allocation7], 128, 128, 8
        $region16: #{tpu_custom_call.1} parent=11 // pred_fallthru
          _
        // Predicated region
        $region17: #{tpu_custom_call.1} parent=11 // pred_check
          %p312 = pneg %p83
        $region18: #{tpu_custom_call.1} parent=11 // pred_check_branch
          %314 = sbr.rel (%p312) target = $region20
        $region19: #{tpu_custom_call.1} parent=11 // pred_region
          %s315 = smul.u32 2, %s28
          %s317 = ssub.s32 32, 32
          %318 = vsyncadd [#allocation10], %s317
          %s319 = smul.addr %s315, 16
          %s320 = scalar_lea.hbm %s1, %s319
          %s321 = sshll.u32 [#allocation9], 4
          %s322 = int_to_ptr.vmem [resolvable:$true] %s321
          %327 = dma.hbm_to_vmem [thread:$0]  %s320, 32, %s322, [#allocation10], 16, 16, 1
        $region20: #{tpu_custom_call.1} parent=11 // pred_fallthru
          _
        // Predicated region
        $region21: #{tpu_custom_call.1} parent=11 // pred_check
          %p328 = pneg %p104
        $region22: #{tpu_custom_call.1} parent=11 // pred_check_branch
          %330 = sbr.rel (%p328) target = $region24
        $region23: #{tpu_custom_call.1} parent=11 // pred_region
          %s332 = ssub.s32 16, 16
          %333 = vsyncadd [#allocation10], %s332
          %s335 = sshll.u32 [#allocation11], 4
          %s336 = int_to_ptr.vmem [resolvable:$true] %s335
          %338 = dma.hbm_to_vmem [thread:$0]  %s2, 16, %s336, [#allocation10]
        $region24: #{tpu_custom_call.1} parent=11 // pred_fallthru
          _
        // Predicated region
        $region25: #{tpu_custom_call.1} parent=11 // pred_check
          %p339 = pneg %p125
        $region26: #{tpu_custom_call.1} parent=11 // pred_check_branch
          %341 = sbr.rel (%p339) target = $region28
        $region27: #{tpu_custom_call.1} parent=11 // pred_region
          %s343 = ssub.s32 16, 16
          %344 = vsyncadd [#allocation13], %s343
          %s346 = sshll.u32 [#allocation12], 4
          %s347 = int_to_ptr.vmem [resolvable:$true] %s346
          %349 = dma.hbm_to_vmem [thread:$0]  %s3, 16, %s347, [#allocation13]
        $region28: #{tpu_custom_call.1} parent=11 // pred_fallthru
          _
      $region12: #{tpu_custom_call.1} parent=5 // pred_fallthru
        _
      %p350 = scmp.lt.s32.totalorder %s19, 2
      // Predicated region
      $region29: #{tpu_custom_call.1} parent=5 // pred_check
        %p351 = pneg %p350
      $region30: #{tpu_custom_call.1} parent=5 // pred_check_branch
        %353 = sbr.rel (%p351) target = $region32
      $region31: #{tpu_custom_call.1} parent=5 // pred_region
        // Predicated region
        $region33: #{tpu_custom_call.1} parent=31 // pred_check
          %p354 = pneg %p145
        $region34: #{tpu_custom_call.1} parent=31 // pred_check_branch
          %356 = sbr.rel (%p354) target = $region36
        $region35: #{tpu_custom_call.1} parent=31 // pred_region
          %s357 = sand.u32 %s19, 1
          %s358 = scalar_lea.sflag [#allocation7], %s357
          %s359 = sand.u32 %s135, 1
          %s360 = smul.addr %s359, 16
          %s361 = scalar_lea.vmem [#allocation14], %s360
          %s363 = ssub.s32 256, 256
          %364 = vsyncadd %s358, %s363
          %s365 = smul.addr %s27, 4
          %s366 = smul.addr %s365, 64
          %s367 = scalar_lea.hbm %s4, %s366
          %s368 = sshll.u32 %s361, 4
          %s369 = int_to_ptr.vmem [resolvable:$true] %s368
          %374 = dma.hbm_to_vmem [thread:$0]  %s367, 256, %s369, %s358, 64, 64, 4
        $region36: #{tpu_custom_call.1} parent=31 // pred_fallthru
          _
        // Predicated region
        $region37: #{tpu_custom_call.1} parent=31 // pred_check
          %p375 = pneg %p171
        $region38: #{tpu_custom_call.1} parent=31 // pred_check_branch
          %377 = sbr.rel (%p375) target = $region40
        $region39: #{tpu_custom_call.1} parent=31 // pred_region
          %s378 = sand.u32 %s19, 1
          %s379 = scalar_lea.sflag [#allocation7], %s378
          %s380 = sand.u32 %s161, 1
          %s381 = smul.addr %s380, 16
          %s382 = scalar_lea.vmem [#allocation15], %s381
          %s384 = ssub.s32 256, 256
          %385 = vsyncadd %s379, %s384
          %s386 = smul.addr %s27, 4
          %s387 = smul.addr %s386, 64
          %s388 = scalar_lea.hbm %s5, %s387
          %s389 = sshll.u32 %s382, 4
          %s390 = int_to_ptr.vmem [resolvable:$true] %s389
          %395 = dma.hbm_to_vmem [thread:$0]  %s388, 256, %s390, %s379, 64, 64, 4
        $region40: #{tpu_custom_call.1} parent=31 // pred_fallthru
          _
        // Predicated region
        $region41: #{tpu_custom_call.1} parent=31 // pred_check
          %p396 = pneg %p197
        $region42: #{tpu_custom_call.1} parent=31 // pred_check_branch
          %398 = sbr.rel (%p396) target = $region44
        $region43: #{tpu_custom_call.1} parent=31 // pred_region
          %s399 = sand.u32 %s19, 1
          %s400 = scalar_lea.sflag [#allocation7], %s399
          %s401 = sand.u32 %s187, 1
          %s402 = smul.addr %s401, 16
          %s403 = scalar_lea.vmem [#allocation16], %s402
          %s405 = ssub.s32 256, 256
          %406 = vsyncadd %s400, %s405
          %s407 = smul.addr %s27, 4
          %s408 = smul.addr %s407, 64
          %s409 = scalar_lea.hbm %s6, %s408
          %s410 = sshll.u32 %s403, 4
          %s411 = int_to_ptr.vmem [resolvable:$true] %s410
          %416 = dma.hbm_to_vmem [thread:$0]  %s409, 256, %s411, %s400, 64, 64, 4
        $region44: #{tpu_custom_call.1} parent=31 // pred_fallthru
          _
        // Predicated region
        $region45: #{tpu_custom_call.1} parent=31 // pred_check
          %p417 = pneg %p223
        $region46: #{tpu_custom_call.1} parent=31 // pred_check_branch
          %419 = sbr.rel (%p417) target = $region48
        $region47: #{tpu_custom_call.1} parent=31 // pred_region
          %s420 = sand.u32 %s19, 1
          %s421 = scalar_lea.sflag [#allocation7], %s420
          %s422 = sand.u32 %s213, 1
          %s423 = smul.addr %s422, 32
          %s424 = scalar_lea.vmem [#allocation17], %s423
          %s426 = ssub.s32 512, 512
          %427 = vsyncadd %s421, %s426
          %s428 = smul.addr %s27, 8
          %s429 = smul.addr %s428, 64
          %s430 = scalar_lea.hbm %s7, %s429
          %s431 = sshll.u32 %s424, 4
          %s432 = int_to_ptr.vmem [resolvable:$true] %s431
          %437 = dma.hbm_to_vmem [thread:$0]  %s430, 512, %s432, %s421, 64, 64, 4
        $region48: #{tpu_custom_call.1} parent=31 // pred_fallthru
          _
        // Predicated region
        $region49: #{tpu_custom_call.1} parent=31 // pred_check
          %p438 = pneg %p249
        $region50: #{tpu_custom_call.1} parent=31 // pred_check_branch
          %440 = sbr.rel (%p438) target = $region52
        $region51: #{tpu_custom_call.1} parent=31 // pred_region
          %s441 = sand.u32 %s19, 1
          %s442 = scalar_lea.sflag [#allocation7], %s441
          %s443 = sand.u32 %s239, 1
          %s444 = smul.addr %s443, 16
          %s445 = scalar_lea.vmem [#allocation18], %s444
          %s447 = ssub.s32 256, 256
          %448 = vsyncadd %s442, %s447
          %s449 = smul.addr %s27, 2
          %s450 = smul.addr %s449, 128
          %s451 = scalar_lea.hbm %s8, %s450
          %s452 = sshll.u32 %s445, 4
          %s453 = int_to_ptr.vmem [resolvable:$true] %s452
          %458 = dma.hbm_to_vmem [thread:$0]  %s451, 256, %s453, %s442, 128, 128, 8
        $region52: #{tpu_custom_call.1} parent=31 // pred_fallthru
          _
      $region32: #{tpu_custom_call.1} parent=5 // pred_fallthru
        _
      %p459 = scmp.le.s32.totalorder 1, %s19
      %p460 = scmp.lt.s32.totalorder %s19, 3
      %p461 = pnand %p459, %p460
      %p462 = pneg %p461
      // Predicated region
      $region53: #{tpu_custom_call.1} parent=5 // pred_check
        _
      $region54: #{tpu_custom_call.1} parent=5 // pred_check_branch
        %464 = sbr.rel (%p461) target = $region56
      $region55: #{tpu_custom_call.1} parent=5 // pred_region
        %s465 = ssub.s32 %s19, 1
        // Predicated region
        $region57: #{tpu_custom_call.1} parent=55 // pred_check
          %p466 = pneg %p57
        $region58: #{tpu_custom_call.1} parent=55 // pred_check_branch
          %468 = sbr.rel (%p466) target = $region60
        $region59: #{tpu_custom_call.1} parent=55 // pred_region
          %469 = dma.done [#allocation7], 256
        $region60: #{tpu_custom_call.1} parent=55 // pred_fallthru
          _
        // Predicated region
        $region61: #{tpu_custom_call.1} parent=55 // pred_check
          %p470 = pneg %p83
        $region62: #{tpu_custom_call.1} parent=55 // pred_check_branch
          %472 = sbr.rel (%p470) target = $region64
        $region63: #{tpu_custom_call.1} parent=55 // pred_region
          %473 = dma.done [#allocation10], 32
        $region64: #{tpu_custom_call.1} parent=55 // pred_fallthru
          _
        // Predicated region
        $region65: #{tpu_custom_call.1} parent=55 // pred_check
          %p474 = pneg %p104
        $region66: #{tpu_custom_call.1} parent=55 // pred_check_branch
          %476 = sbr.rel (%p474) target = $region68
        $region67: #{tpu_custom_call.1} parent=55 // pred_region
          %477 = dma.done [#allocation10], 16
        $region68: #{tpu_custom_call.1} parent=55 // pred_fallthru
          _
        // Predicated region
        $region69: #{tpu_custom_call.1} parent=55 // pred_check
          %p478 = pneg %p125
        $region70: #{tpu_custom_call.1} parent=55 // pred_check_branch
          %480 = sbr.rel (%p478) target = $region72
        $region71: #{tpu_custom_call.1} parent=55 // pred_region
          %481 = dma.done [#allocation13], 16
        $region72: #{tpu_custom_call.1} parent=55 // pred_fallthru
          _
        %s482 = sand.u32 %s24, 1
        %s483 = scalar_lea.sflag [#allocation7], %s482
        %s484 = sand.u32 %s138, 1
        %s485 = smul.addr %s484, 16
        %s486 = scalar_lea.vmem [#allocation14], %s485
        // Predicated region
        $region73: #{tpu_custom_call.1} parent=55 // pred_check
          %p487 = pneg %p151
        $region74: #{tpu_custom_call.1} parent=55 // pred_check_branch
          %489 = sbr.rel (%p487) target = $region76
        $region75: #{tpu_custom_call.1} parent=55 // pred_region
          %490 = dma.done %s483, 256
        $region76: #{tpu_custom_call.1} parent=55 // pred_fallthru
          _
        %s491 = sand.u32 %s24, 1
        %s492 = scalar_lea.sflag [#allocation7], %s491
        %s493 = sand.u32 %s164, 1
        %s494 = smul.addr %s493, 16
        %s495 = scalar_lea.vmem [#allocation15], %s494
        // Predicated region
        $region77: #{tpu_custom_call.1} parent=55 // pred_check
          %p496 = pneg %p177
        $region78: #{tpu_custom_call.1} parent=55 // pred_check_branch
          %498 = sbr.rel (%p496) target = $region80
        $region79: #{tpu_custom_call.1} parent=55 // pred_region
          %499 = dma.done %s492, 256
        $region80: #{tpu_custom_call.1} parent=55 // pred_fallthru
          _
        %s500 = sand.u32 %s24, 1
        %s501 = scalar_lea.sflag [#allocation7], %s500
        %s502 = sand.u32 %s190, 1
        %s503 = smul.addr %s502, 16
        %s504 = scalar_lea.vmem [#allocation16], %s503
        // Predicated region
        $region81: #{tpu_custom_call.1} parent=55 // pred_check
          %p505 = pneg %p203
        $region82: #{tpu_custom_call.1} parent=55 // pred_check_branch
          %507 = sbr.rel (%p505) target = $region84
        $region83: #{tpu_custom_call.1} parent=55 // pred_region
          %508 = dma.done %s501, 256
        $region84: #{tpu_custom_call.1} parent=55 // pred_fallthru
          _
        %s509 = sand.u32 %s24, 1
        %s510 = scalar_lea.sflag [#allocation7], %s509
        %s511 = sand.u32 %s216, 1
        %s512 = smul.addr %s511, 32
        %s513 = scalar_lea.vmem [#allocation17], %s512
        // Predicated region
        $region85: #{tpu_custom_call.1} parent=55 // pred_check
          %p514 = pneg %p229
        $region86: #{tpu_custom_call.1} parent=55 // pred_check_branch
          %516 = sbr.rel (%p514) target = $region88
        $region87: #{tpu_custom_call.1} parent=55 // pred_region
          %517 = dma.done %s510, 512
        $region88: #{tpu_custom_call.1} parent=55 // pred_fallthru
          _
        %s518 = sand.u32 %s24, 1
        %s519 = scalar_lea.sflag [#allocation7], %s518
        %s520 = sand.u32 %s242, 1
        %s521 = smul.addr %s520, 16
        %s522 = scalar_lea.vmem [#allocation18], %s521
        // Predicated region
        $region89: #{tpu_custom_call.1} parent=55 // pred_check
          %p523 = pneg %p255
        $region90: #{tpu_custom_call.1} parent=55 // pred_check_branch
          %525 = sbr.rel (%p523) target = $region92
        $region91: #{tpu_custom_call.1} parent=55 // pred_region
          %526 = dma.done %s519, 256
        $region92: #{tpu_custom_call.1} parent=55 // pred_fallthru
          _
        %p527 = pneg %p57
        %p528 = pneg %p54
        %p529 = pneg %p83
        %p530 = pneg %p80
        %p531 = pneg %p104
        %p532 = pneg %p101
        %p533 = pneg %p125
        %p534 = pneg %p122
        %s535 = sand.u32 %s24, 1
        %s536 = scalar_lea.sflag [#allocation7], %s535
        %s537 = sand.u32 %s138, 1
        %s538 = smul.addr %s537, 16
        %s539 = scalar_lea.vmem [#allocation14], %s538
        %p540 = pneg %p151
        %p541 = pneg %p148
        %s542 = sand.u32 %s24, 1
        %s543 = scalar_lea.sflag [#allocation7], %s542
        %s544 = sand.u32 %s164, 1
        %s545 = smul.addr %s544, 16
        %s546 = scalar_lea.vmem [#allocation15], %s545
        %p547 = pneg %p177
        %p548 = pneg %p174
        %s549 = sand.u32 %s24, 1
        %s550 = scalar_lea.sflag [#allocation7], %s549
        %s551 = sand.u32 %s190, 1
        %s552 = smul.addr %s551, 16
        %s553 = scalar_lea.vmem [#allocation16], %s552
        %p554 = pneg %p203
        %p555 = pneg %p200
        %s556 = sand.u32 %s24, 1
        %s557 = scalar_lea.sflag [#allocation7], %s556
        %s558 = sand.u32 %s216, 1
        %s559 = smul.addr %s558, 32
        %s560 = scalar_lea.vmem [#allocation17], %s559
        %p561 = pneg %p229
        %p562 = pneg %p226
        %s563 = sand.u32 %s24, 1
        %s564 = scalar_lea.sflag [#allocation7], %s563
        %s565 = sand.u32 %s242, 1
        %s566 = smul.addr %s565, 16
        %s567 = scalar_lea.vmem [#allocation18], %s566
        %p568 = pneg %p255
        %p569 = pneg %p252
        %p570 = pneg %p281
        %p571 = pneg %p278
        %s572 = smul.u32 2, %s28
        %s573 = smul.u32 2, %s28
        %s574 = smul.u32 2, %s28
        %p576 = scmp.eq.s32.totalorder %s29, 0
        // Predicated region
        $region93: #{tpu_custom_call.1} parent=55 // pred_check
          %p577 = pneg %p576
        $region94: #{tpu_custom_call.1} parent=55 // pred_check_branch
          %579 = sbr.rel (%p577) target = $region96
        $region95: #{tpu_custom_call.1} parent=55 // pred_region
          %v580 = vld [vmem:[#allocation6] sm:$0xff]
          %v581 = vld [vmem:[#allocation6 + $0x8] sm:$0xff]
          %v582 = vld [vmem:[#allocation11] sm:$0x1]
          %v583 = vld [vmem:[#allocation12] sm:$0x1]
          %vm584 = vcmask 261120
          %v585 = vsel %vm584, %v580, 0.0
          %586 = vadd.xlane.f32.xlu0 %v585
          %v587 = vpop.xlane.xlu0 %586
          %v588 = vsel %vm584, %v581, 0.0
          %589 = vadd.xlane.f32.xlu0 %v588
          %v590 = vpop.xlane.xlu0 %589
          %v591 = vrcp.pop 32.0
          %v592 = vmul.f32 %v587, %v591
          %v593 = vmul.f32 %v590, %v591
          %v594 = vsub.f32 %v580, %v592
          %v595 = vsub.f32 %v581, %v593
          %v596 = vmul.f32 %v594, %v594
          %v597 = vmul.f32 %v595, %v595
          %v598 = vsel %vm584, %v596, 0.0
          %599 = vadd.xlane.f32.xlu0 %v598
          %v600 = vpop.xlane.xlu0 %599
          %v601 = vsel %vm584, %v597, 0.0
          %602 = vadd.xlane.f32.xlu0 %v601
          %v603 = vpop.xlane.xlu0 %602
          %v604 = vmul.f32 %v600, %v591
          %v605 = vmul.f32 %v603, %v591
          %v606 = vadd.f32 %v604, 1e-05
          %v607 = vadd.f32 %v605, 1e-05
          %v608 = vrsqrt.pop %v606
          %v609 = vrsqrt.pop %v607
          %v610 = vmul.f32 %v594, %v608
          %v611 = vmul.f32 %v595, %v609
          %v613 = vlaneseq
          %v614 = vshrl.u32 %v613, 7
          %v615 = vsub.s32 0, %v614
          %v616 = vrot.slane %v582, %v615
          %v618 = vmul.f32 %v610, %v616
          %v619 = vmul.f32 %v611, %v616
          %v621 = vlaneseq
          %v622 = vshrl.u32 %v621, 7
          %v623 = vsub.s32 0, %v622
          %v624 = vrot.slane %v583, %v623
          %v626 = vadd.f32 %v618, %v624
          %v627 = vadd.f32 %v619, %v624
          %628 = vst.msk [vmem:[#allocation19] sm:$0xff] %vm584, %v626
          %629 = vst.msk [vmem:[#allocation19 + $0x8] sm:$0xff] %vm584, %v627
        $region96: #{tpu_custom_call.1} parent=55 // pred_fallthru
          _
        %v630 = vld [vmem:[#allocation19] sm:$0xff]
        %v631 = vld [vmem:[#allocation19 + $0x8] sm:$0xff]
        %v632 = vpack.c.bf16 %v631, %v630
        %v633 = vld [vmem:[%s522] sm:$0xff]
        %v634 = vld [vmem:[%s522 + $0x8] sm:$0xff]
        %v635 = vld [vmem:[%s486] sm:$0xf]
        %v636 = vld [vmem:[%s486 + $0x4] sm:$0xf]
        %v637 = vld [vmem:[%s486 + $0x8] sm:$0xf]
        %v638 = vld [vmem:[%s486 + $0xc] sm:$0xf]
        %v643 = vunpack.c.l.b16 %v635
        %v644 = vunpack.c.l.b16 %v636
        %v645 = vunpack.c.l.b16 %v637
        %v646 = vunpack.c.l.b16 %v638
        %v647 = vpack.c.b16 %v644, %v643
        %v648 = vpack.c.b16 %v646, %v645
        %vm651 = vcmask 261120
        %v653 = vsel %vm651, %v632, 0
        %655 = vmatprep.subr.bf16.mxu0 0
        %656 = vmatpush1.bf16.msra.mxu0 %v647
        %657 = vmatprep.subr.bf16.mxu0 0
        %658 = vmatpush1.bf16.msra.mxu0 %v648
        %659 = vmatprep.subr.bf16.mxu0 0
        %660 = vmatpush1.bf16.msra.mxu0 0
        %661 = vmatprep.subr.bf16.mxu0 0
        %662 = vmatpush1.bf16.msra.mxu0 0
        %663 = vmatprep.subr.bf16.mxu0 0
        %664 = vmatpush1.bf16.msra.mxu0 0
        %665 = vmatprep.subr.bf16.mxu0 0
        %666 = vmatpush1.bf16.msra.mxu0 0
        %667 = vmatprep.subr.bf16.mxu0 0
        %668 = vmatpush1.bf16.msra.mxu0 0
        %669 = vmatprep.subr.bf16.mxu0 0
        %670 = vmatpush1.bf16.msra.mxu0 0
        %671 = vmatprep.subr.bf16.mxu0 0
        %672 = vmatpush1.bf16.msra.mxu0 0
        %673 = vmatprep.subr.bf16.mxu0 0
        %674 = vmatpush1.bf16.msra.mxu0 0
        %675 = vmatprep.subr.bf16.mxu0 0
        %676 = vmatpush1.bf16.msra.mxu0 0
        %677 = vmatprep.subr.bf16.mxu0 0
        %678 = vmatpush1.bf16.msra.mxu0 0
        %679 = vmatprep.subr.bf16.mxu0 0
        %680 = vmatpush1.bf16.msra.mxu0 0
        %681 = vmatprep.subr.bf16.mxu0 0
        %682 = vmatpush1.bf16.msra.mxu0 0
        %683 = vmatprep.subr.bf16.mxu0 0
        %684 = vmatpush1.bf16.msra.mxu0 0
        %685 = vmatprep.subr.bf16.mxu0 0
        %686 = vmatpush1.bf16.msra.mxu0 0
        %687 = vmatprep.mubr.bf16.mxu0 0
        %688 = vmatmul.mubr.bf16.gmra.mrb[0].mxu0 %v653
        %v689 = vpop.f32.mrb[0].mxu0
        %v690 = vadd.f32 0.0, %v689
        %v691 = vpop.f32.mrb[0].mxu0
        %v692 = vpop.f32.mrb[0].mxu0
        %v693 = vadd.f32 0.0, %v692
        %v694 = vpop.f32.mrb[0].mxu0
        %695 = vdwg.mxu0
        %v696 = vlaneseq
        %v697 = vshrl.u32 %v696, 7
        %v698 = vsub.s32 0, %v697
        %v699 = vrot.slane %v633, %v698
        %v700 = vadd.f32 %v690, %v699
        %v701 = vadd.f32 %v693, %v699
        %v702 = vmul.f32 %v700, 0.35355338
        %v703 = vmul.f32 %v701, 0.35355338
        %v704 = vpack.c.bf16 %v703, %v702
        %v706 = vunpack.c.l.b16 %v704
        %v707 = vunpack.c.h.b16 %v704
        %v708 = vpack.c.b16 %v706, %v706
        %v709 = vpack.c.b16 %v707, %v707
        %vm712 = vcmask 257024
        %713 = vst.msk [vmem:[#allocation2] sm:$0xf] %vm712, %v708
        %714 = vst.msk [vmem:[#allocation2 + $0x4] sm:$0xf] %vm712, %v709
        %v715 = vlaneseq
        %v716 = vshrl.u32 %v715, 7
        %v717 = vsub.s32 1, %v716
        %v718 = vrot.slane %v633, %v717
        %720 = vrot.lane.b32.xlu0 %v718, 32
        %v721 = vpop.permute.xlu0 %720
        %v723 = vadd.f32 %v690, %v721
        %v724 = vadd.f32 %v693, %v721
        %v725 = vpack.c.bf16 %v724, %v723
        %v727 = vunpack.c.l.b16 %v725
        %v728 = vunpack.c.h.b16 %v725
        %v729 = vpack.c.b16 %v727, %v727
        %v730 = vpack.c.b16 %v728, %v728
        %731 = vrot.lane.b32.xlu0 %v729, 96
        %v732 = vpop.permute.xlu0 %731
        %733 = vrot.lane.b32.xlu0 %v730, 96
        %v734 = vpop.permute.xlu0 %733
        %737 = vst.msk [vmem:[#allocation3] sm:$0xf] %vm712, %v732
        %738 = vst.msk [vmem:[#allocation3 + $0x4] sm:$0xf] %vm712, %v734
        %v739 = vlaneseq
        %v740 = vshrl.u32 %v739, 7
        %v741 = vsub.s32 2, %v740
        %v742 = vrot.slane %v633, %v741
        %744 = vrot.lane.b32.xlu0 %v742, 64
        %v745 = vpop.permute.xlu0 %744
        %v747 = vadd.f32 %v690, %v745
        %v748 = vadd.f32 %v693, %v745
        %v749 = vpack.c.bf16 %v748, %v747
        %v751 = vunpack.c.l.b16 %v749
        %v752 = vunpack.c.h.b16 %v749
        %v753 = vpack.c.b16 %v751, %v751
        %v754 = vpack.c.b16 %v752, %v752
        %755 = vrot.lane.b32.xlu0 %v753, 64
        %v756 = vpop.permute.xlu0 %755
        %757 = vrot.lane.b32.xlu0 %v754, 64
        %v758 = vpop.permute.xlu0 %757
        %761 = vst.msk [vmem:[#allocation4] sm:$0xf] %vm712, %v756
        %762 = vst.msk [vmem:[#allocation4 + $0x4] sm:$0xf] %vm712, %v758
        %v763 = vld [vmem:[#allocation9] sm:$0x1]
        %v764 = vld [vmem:[#allocation9 + $0x1] sm:$0x1]
        %v765 = vld [vmem:[#allocation2] sm:$0xf]
        %v766 = vld [vmem:[#allocation2 + $0x4] sm:$0xf]
        %v767 = vld [vmem:[#allocation3] sm:$0xf]
        %v768 = vld [vmem:[#allocation3 + $0x4] sm:$0xf]
        %v769 = vld [vmem:[#allocation4] sm:$0xf]
        %v770 = vld [vmem:[#allocation4 + $0x4] sm:$0xf]
        %v773 = vlaneseq
        %v774 = vshrl.u32 %v773, 7
        %v775 = vsub.s32 0, %v774
        %v776 = vrot.slane %v763, %v775
        %v777 = vlaneseq
        %v778 = vshrl.u32 %v777, 7
        %v779 = vsub.s32 0, %v778
        %v780 = vrot.slane %v764, %v779
        %vm783 = vcmask 64512
        %v785 = vsel %vm783, %v765, 0
        %v788 = vsel %vm783, %v767, 0
        %790 = vmatprep.subr.bf16.mxu0 0
        %791 = vmatpush1.bf16.xpose.msra.mxu0 %v788
        %792 = vmatprep.subr.bf16.mxu0 0
        %793 = vmatpush1.bf16.xpose.msra.mxu0 0
        %794 = vmatprep.subr.bf16.mxu0 0
        %795 = vmatpush1.bf16.xpose.msra.mxu0 0
        %796 = vmatprep.subr.bf16.mxu0 0
        %797 = vmatpush1.bf16.xpose.msra.mxu0 0
        %798 = vmatprep.subr.bf16.mxu0 0
        %799 = vmatpush1.bf16.xpose.msra.mxu0 0
        %800 = vmatprep.subr.bf16.mxu0 0
        %801 = vmatpush1.bf16.xpose.msra.mxu0 0
        %802 = vmatprep.subr.bf16.mxu0 0
        %803 = vmatpush1.bf16.xpose.msra.mxu0 0
        %804 = vmatprep.subr.bf16.mxu0 0
        %805 = vmatpush1.bf16.xpose.msra.mxu0 0
        %806 = vmatprep.subr.bf16.mxu0 0
        %807 = vmatpush1.bf16.xpose.msra.mxu0 0
        %808 = vmatprep.subr.bf16.mxu0 0
        %809 = vmatpush1.bf16.xpose.msra.mxu0 0
        %810 = vmatprep.subr.bf16.mxu0 0
        %811 = vmatpush1.bf16.xpose.msra.mxu0 0
        %812 = vmatprep.subr.bf16.mxu0 0
        %813 = vmatpush1.bf16.xpose.msra.mxu0 0
        %814 = vmatprep.subr.bf16.mxu0 0
        %815 = vmatpush1.bf16.xpose.msra.mxu0 0
        %816 = vmatprep.subr.bf16.mxu0 0
        %817 = vmatpush1.bf16.xpose.msra.mxu0 0
        %818 = vmatprep.subr.bf16.mxu0 0
        %819 = vmatpush1.bf16.xpose.msra.mxu0 0
        %820 = vmatprep.subr.bf16.mxu0 0
        %821 = vmatpush1.bf16.xpose.msra.mxu0 0
        %822 = vmatprep.mubr.bf16.mxu0 0
        %823 = vmatmul.mubr.bf16.gmra.mrb[0].mxu0 %v785
        %v824 = vpop.f32.mrb[0].mxu0
        %v825 = vadd.f32 %v776, %v824
        %v826 = vpop.f32.mrb[0].mxu0
        %v827 = vpop.f32.mrb[0].mxu0
        %v828 = vpop.f32.mrb[0].mxu0
        %829 = vdwg.mxu0
        %v831 = vsel %vm783, %v766, 0
        %v834 = vsel %vm783, %v768, 0
        %836 = vmatprep.subr.bf16.mxu0 0
        %837 = vmatpush1.bf16.xpose.msra.mxu0 %v834
        %838 = vmatprep.subr.bf16.mxu0 0
        %839 = vmatpush1.bf16.xpose.msra.mxu0 0
        %840 = vmatprep.subr.bf16.mxu0 0
        %841 = vmatpush1.bf16.xpose.msra.mxu0 0
        %842 = vmatprep.subr.bf16.mxu0 0
        %843 = vmatpush1.bf16.xpose.msra.mxu0 0
        %844 = vmatprep.subr.bf16.mxu0 0
        %845 = vmatpush1.bf16.xpose.msra.mxu0 0
        %846 = vmatprep.subr.bf16.mxu0 0
        %847 = vmatpush1.bf16.xpose.msra.mxu0 0
        %848 = vmatprep.subr.bf16.mxu0 0
        %849 = vmatpush1.bf16.xpose.msra.mxu0 0
        %850 = vmatprep.subr.bf16.mxu0 0
        %851 = vmatpush1.bf16.xpose.msra.mxu0 0
        %852 = vmatprep.subr.bf16.mxu0 0
        %853 = vmatpush1.bf16.xpose.msra.mxu0 0
        %854 = vmatprep.subr.bf16.mxu0 0
        %855 = vmatpush1.bf16.xpose.msra.mxu0 0
        %856 = vmatprep.subr.bf16.mxu0 0
        %857 = vmatpush1.bf16.xpose.msra.mxu0 0
        %858 = vmatprep.subr.bf16.mxu0 0
        %859 = vmatpush1.bf16.xpose.msra.mxu0 0
        %860 = vmatprep.subr.bf16.mxu0 0
        %861 = vmatpush1.bf16.xpose.msra.mxu0 0
        %862 = vmatprep.subr.bf16.mxu0 0
        %863 = vmatpush1.bf16.xpose.msra.mxu0 0
        %864 = vmatprep.subr.bf16.mxu0 0
        %865 = vmatpush1.bf16.xpose.msra.mxu0 0
        %866 = vmatprep.subr.bf16.mxu0 0
        %867 = vmatpush1.bf16.xpose.msra.mxu0 0
        %868 = vmatprep.mubr.bf16.mxu0 0
        %869 = vmatmul.mubr.bf16.gmra.mrb[0].mxu0 %v831
        %v870 = vpop.f32.mrb[0].mxu0
        %v871 = vadd.f32 %v780, %v870
        %v872 = vpop.f32.mrb[0].mxu0
        %v873 = vpop.f32.mrb[0].mxu0
        %v874 = vpop.f32.mrb[0].mxu0
        %875 = vdwg.mxu0
        %v876 = vlaneseq
        %v877 = vshrl.u32 %v876, 7
        %v878 = vlaneseq
        %v879 = vand.u32 %v878, 127
        %vm880 = vcmp.le.s32.totalorder %v879, %v877
        %v881 = vsel %vm880, 1, 0
        %vm882 = vcmp.eq.s32.totalorder %v881, 1
        %v883 = vsel %vm882, %v825, -1e+09
        %v884 = vsel %vm882, %v871, -1e+09
        %v885 = vsel %vm783, %v883, -inf
        %886 = vmax.xlane.f32.xlu0 %v885
        %v887 = vpop.xlane.xlu0 %886
        %v888 = vsel %vm783, %v884, -inf
        %889 = vmax.xlane.f32.xlu0 %v888
        %v890 = vpop.xlane.xlu0 %889
        %v891 = vsub.f32 %v883, %v887
        %v892 = vsub.f32 %v884, %v890
        %v893 = vmul.f32 %v891, 1.442695
        %v894 = vpow.pop %v893
        %v895 = vmul.f32 %v892, 1.442695
        %v896 = vpow.pop %v895
        %v897 = vsel %vm783, %v894, 0.0
        %898 = vadd.xlane.f32.xlu0 %v897
        %v899 = vpop.xlane.xlu0 %898
        %v900 = vsel %vm783, %v896, 0.0
        %901 = vadd.xlane.f32.xlu0 %v900
        %v902 = vpop.xlane.xlu0 %901
        %v903 = vrcp.pop %v899
        %v904 = vrcp.pop %v902
        %v905 = vmul.f32 %v894, %v903
        %v906 = vmul.f32 %v896, %v904
        %v907 = vpack.c.bf16 %v905, %v905
        %v908 = vpack.c.bf16 %v906, %v906
        %v910 = vsel %vm783, %v907, 0
        %vm912 = vcmask 1043456
        %v914 = vsel %vm912, %v769, 0
        %916 = vmatprep.subr.bf16.mxu0 0
        %917 = vmatpush1.bf16.msra.mxu0 %v914
        %918 = vmatprep.subr.bf16.mxu0 0
        %919 = vmatpush1.bf16.msra.mxu0 0
        %920 = vmatprep.subr.bf16.mxu0 0
        %921 = vmatpush1.bf16.msra.mxu0 0
        %922 = vmatprep.subr.bf16.mxu0 0
        %923 = vmatpush1.bf16.msra.mxu0 0
        %924 = vmatprep.subr.bf16.mxu0 0
        %925 = vmatpush1.bf16.msra.mxu0 0
        %926 = vmatprep.subr.bf16.mxu0 0
        %927 = vmatpush1.bf16.msra.mxu0 0
        %928 = vmatprep.subr.bf16.mxu0 0
        %929 = vmatpush1.bf16.msra.mxu0 0
        %930 = vmatprep.subr.bf16.mxu0 0
        %931 = vmatpush1.bf16.msra.mxu0 0
        %932 = vmatprep.subr.bf16.mxu0 0
        %933 = vmatpush1.bf16.msra.mxu0 0
        %934 = vmatprep.subr.bf16.mxu0 0
        %935 = vmatpush1.bf16.msra.mxu0 0
        %936 = vmatprep.subr.bf16.mxu0 0
        %937 = vmatpush1.bf16.msra.mxu0 0
        %938 = vmatprep.subr.bf16.mxu0 0
        %939 = vmatpush1.bf16.msra.mxu0 0
        %940 = vmatprep.subr.bf16.mxu0 0
        %941 = vmatpush1.bf16.msra.mxu0 0
        %942 = vmatprep.subr.bf16.mxu0 0
        %943 = vmatpush1.bf16.msra.mxu0 0
        %944 = vmatprep.subr.bf16.mxu0 0
        %945 = vmatpush1.bf16.msra.mxu0 0
        %946 = vmatprep.subr.bf16.mxu0 0
        %947 = vmatpush1.bf16.msra.mxu0 0
        %948 = vmatprep.mubr.bf16.mxu0 0
        %949 = vmatmul.mubr.bf16.gmra.mrb[0].mxu0 %v910
        %v950 = vpop.f32.mrb[0].mxu0
        %v951 = vadd.f32 0.0, %v950
        %v952 = vpop.f32.mrb[0].mxu0
        %v953 = vpop.f32.mrb[0].mxu0
        %v954 = vpop.f32.mrb[0].mxu0
        %955 = vdwg.mxu0
        %v957 = vsel %vm783, %v908, 0
        %v960 = vsel %vm912, %v770, 0
        %962 = vmatprep.subr.bf16.mxu0 0
        %963 = vmatpush1.bf16.msra.mxu0 %v960
        %964 = vmatprep.subr.bf16.mxu0 0
        %965 = vmatpush1.bf16.msra.mxu0 0
        %966 = vmatprep.subr.bf16.mxu0 0
        %967 = vmatpush1.bf16.msra.mxu0 0
        %968 = vmatprep.subr.bf16.mxu0 0
        %969 = vmatpush1.bf16.msra.mxu0 0
        %970 = vmatprep.subr.bf16.mxu0 0
        %971 = vmatpush1.bf16.msra.mxu0 0
        %972 = vmatprep.subr.bf16.mxu0 0
        %973 = vmatpush1.bf16.msra.mxu0 0
        %974 = vmatprep.subr.bf16.mxu0 0
        %975 = vmatpush1.bf16.msra.mxu0 0
        %976 = vmatprep.subr.bf16.mxu0 0
        %977 = vmatpush1.bf16.msra.mxu0 0
        %978 = vmatprep.subr.bf16.mxu0 0
        %979 = vmatpush1.bf16.msra.mxu0 0
        %980 = vmatprep.subr.bf16.mxu0 0
        %981 = vmatpush1.bf16.msra.mxu0 0
        %982 = vmatprep.subr.bf16.mxu0 0
        %983 = vmatpush1.bf16.msra.mxu0 0
        %984 = vmatprep.subr.bf16.mxu0 0
        %985 = vmatpush1.bf16.msra.mxu0 0
        %986 = vmatprep.subr.bf16.mxu0 0
        %987 = vmatpush1.bf16.msra.mxu0 0
        %988 = vmatprep.subr.bf16.mxu0 0
        %989 = vmatpush1.bf16.msra.mxu0 0
        %990 = vmatprep.subr.bf16.mxu0 0
        %991 = vmatpush1.bf16.msra.mxu0 0
        %992 = vmatprep.subr.bf16.mxu0 0
        %993 = vmatpush1.bf16.msra.mxu0 0
        %994 = vmatprep.mubr.bf16.mxu0 0
        %995 = vmatmul.mubr.bf16.gmra.mrb[0].mxu0 %v957
        %v996 = vpop.f32.mrb[0].mxu0
        %v997 = vadd.f32 0.0, %v996
        %v998 = vpop.f32.mrb[0].mxu0
        %v999 = vpop.f32.mrb[0].mxu0
        %v1000 = vpop.f32.mrb[0].mxu0
        %1001 = vdwg.mxu0
        %v1002 = vpack.c.bf16 %v951, %v951
        %v1003 = vpack.c.bf16 %v997, %v997
        %vm1004 = vcmask 60416
        %1005 = vst.msk [vmem:[#allocation5] sm:$0xf] %vm1004, %v1002
        %1006 = vst.msk [vmem:[#allocation5 + $0x4] sm:$0xf] %vm1004, %v1003
        %v1007 = vld [vmem:[#allocation2] sm:$0xf]
        %v1008 = vld [vmem:[#allocation2 + $0x4] sm:$0xf]
        %v1009 = vld [vmem:[#allocation3] sm:$0xf]
        %v1010 = vld [vmem:[#allocation3 + $0x4] sm:$0xf]
        %v1011 = vld [vmem:[#allocation4] sm:$0xf]
        %v1012 = vld [vmem:[#allocation4 + $0x4] sm:$0xf]
        %v1014 = vunpack.c.l.b16 %v1007
        %v1015 = vpack.c.b16 %v1014, %v1014
        %1016 = vrot.lane.b32.xlu0 %v1015, 120
        %v1017 = vpop.permute.xlu0 %1016
        %v1019 = vunpack.c.l.b16 %v1009
        %v1020 = vpack.c.b16 %v1019, %v1019
        %1021 = vrot.lane.b32.xlu0 %v1020, 120
        %v1022 = vpop.permute.xlu0 %1021
        %v1024 = vsel %vm783, %v1017, 0
        %v1027 = vsel %vm783, %v1022, 0
        %1029 = vmatprep.subr.bf16.mxu0 0
        %1030 = vmatpush1.bf16.xpose.msra.mxu0 %v1027
        %1031 = vmatprep.subr.bf16.mxu0 0
        %1032 = vmatpush1.bf16.xpose.msra.mxu0 0
        %1033 = vmatprep.subr.bf16.mxu0 0
        %1034 = vmatpush1.bf16.xpose.msra.mxu0 0
        %1035 = vmatprep.subr.bf16.mxu0 0
        %1036 = vmatpush1.bf16.xpose.msra.mxu0 0
        %1037 = vmatprep.subr.bf16.mxu0 0
        %1038 = vmatpush1.bf16.xpose.msra.mxu0 0
        %1039 = vmatprep.subr.bf16.mxu0 0
        %1040 = vmatpush1.bf16.xpose.msra.mxu0 0
        %1041 = vmatprep.subr.bf16.mxu0 0
        %1042 = vmatpush1.bf16.xpose.msra.mxu0 0
        %1043 = vmatprep.subr.bf16.mxu0 0
        %1044 = vmatpush1.bf16.xpose.msra.mxu0 0
        %1045 = vmatprep.subr.bf16.mxu0 0
        %1046 = vmatpush1.bf16.xpose.msra.mxu0 0
        %1047 = vmatprep.subr.bf16.mxu0 0
        %1048 = vmatpush1.bf16.xpose.msra.mxu0 0
        %1049 = vmatprep.subr.bf16.mxu0 0
        %1050 = vmatpush1.bf16.xpose.msra.mxu0 0
        %1051 = vmatprep.subr.bf16.mxu0 0
        %1052 = vmatpush1.bf16.xpose.msra.mxu0 0
        %1053 = vmatprep.subr.bf16.mxu0 0
        %1054 = vmatpush1.bf16.xpose.msra.mxu0 0
        %1055 = vmatprep.subr.bf16.mxu0 0
        %1056 = vmatpush1.bf16.xpose.msra.mxu0 0
        %1057 = vmatprep.subr.bf16.mxu0 0
        %1058 = vmatpush1.bf16.xpose.msra.mxu0 0
        %1059 = vmatprep.subr.bf16.mxu0 0
        %1060 = vmatpush1.bf16.xpose.msra.mxu0 0
        %1061 = vmatprep.mubr.bf16.mxu0 0
        %1062 = vmatmul.mubr.bf16.gmra.mrb[0].mxu0 %v1024
        %v1063 = vpop.f32.mrb[0].mxu0
        %v1064 = vadd.f32 %v776, %v1063
        %v1065 = vpop.f32.mrb[0].mxu0
        %v1066 = vpop.f32.mrb[0].mxu0
        %v1067 = vpop.f32.mrb[0].mxu0
        %1068 = vdwg.mxu0
        %v1070 = vunpack.c.l.b16 %v1008
        %v1071 = vpack.c.b16 %v1070, %v1070
        %1072 = vrot.lane.b32.xlu0 %v1071, 120
        %v1073 = vpop.permute.xlu0 %1072
        %v1075 = vunpack.c.l.b16 %v1010
        %v1076 = vpack.c.b16 %v1075, %v1075
        %1077 = vrot.lane.b32.xlu0 %v1076, 120
        %v1078 = vpop.permute.xlu0 %1077
        %v1080 = vsel %vm783, %v1073, 0
        %v1083 = vsel %vm783, %v1078, 0
        %1085 = vmatprep.subr.bf16.mxu0 0
        %1086 = vmatpush1.bf16.xpose.msra.mxu0 %v1083
        %1087 = vmatprep.subr.bf16.mxu0 0
        %1088 = vmatpush1.bf16.xpose.msra.mxu0 0
        %1089 = vmatprep.subr.bf16.mxu0 0
        %1090 = vmatpush1.bf16.xpose.msra.mxu0 0
        %1091 = vmatprep.subr.bf16.mxu0 0
        %1092 = vmatpush1.bf16.xpose.msra.mxu0 0
        %1093 = vmatprep.subr.bf16.mxu0 0
        %1094 = vmatpush1.bf16.xpose.msra.mxu0 0
        %1095 = vmatprep.subr.bf16.mxu0 0
        %1096 = vmatpush1.bf16.xpose.msra.mxu0 0
        %1097 = vmatprep.subr.bf16.mxu0 0
        %1098 = vmatpush1.bf16.xpose.msra.mxu0 0
        %1099 = vmatprep.subr.bf16.mxu0 0
        %1100 = vmatpush1.bf16.xpose.msra.mxu0 0
        %1101 = vmatprep.subr.bf16.mxu0 0
        %1102 = vmatpush1.bf16.xpose.msra.mxu0 0
        %1103 = vmatprep.subr.bf16.mxu0 0
        %1104 = vmatpush1.bf16.xpose.msra.mxu0 0
        %1105 = vmatprep.subr.bf16.mxu0 0
        %1106 = vmatpush1.bf16.xpose.msra.mxu0 0
        %1107 = vmatprep.subr.bf16.mxu0 0
        %1108 = vmatpush1.bf16.xpose.msra.mxu0 0
        %1109 = vmatprep.subr.bf16.mxu0 0
        %1110 = vmatpush1.bf16.xpose.msra.mxu0 0
        %1111 = vmatprep.subr.bf16.mxu0 0
        %1112 = vmatpush1.bf16.xpose.msra.mxu0 0
        %1113 = vmatprep.subr.bf16.mxu0 0
        %1114 = vmatpush1.bf16.xpose.msra.mxu0 0
        %1115 = vmatprep.subr.bf16.mxu0 0
        %1116 = vmatpush1.bf16.xpose.msra.mxu0 0
        %1117 = vmatprep.mubr.bf16.mxu0 0
        %1118 = vmatmul.mubr.bf16.gmra.mrb[0].mxu0 %v1080
        %v1119 = vpop.f32.mrb[0].mxu0
        %v1120 = vadd.f32 %v780, %v1119
        %v1121 = vpop.f32.mrb[0].mxu0
        %v1122 = vpop.f32.mrb[0].mxu0
        %v1123 = vpop.f32.mrb[0].mxu0
        %1124 = vdwg.mxu0
        %v1125 = vsel %vm882, %v1064, -1e+09
        %v1126 = vsel %vm882, %v1120, -1e+09
        %v1127 = vsel %vm783, %v1125, -inf
        %1128 = vmax.xlane.f32.xlu0 %v1127
        %v1129 = vpop.xlane.xlu0 %1128
        %v1130 = vsel %vm783, %v1126, -inf
        %1131 = vmax.xlane.f32.xlu0 %v1130
        %v1132 = vpop.xlane.xlu0 %1131
        %v1133 = vsub.f32 %v1125, %v1129
        %v1134 = vsub.f32 %v1126, %v1132
        %v1135 = vmul.f32 %v1133, 1.442695
        %v1136 = vpow.pop %v1135
        %v1137 = vmul.f32 %v1134, 1.442695
        %v1138 = vpow.pop %v1137
        %v1139 = vsel %vm783, %v1136, 0.0
        %1140 = vadd.xlane.f32.xlu0 %v1139
        %v1141 = vpop.xlane.xlu0 %1140
        %v1142 = vsel %vm783, %v1138, 0.0
        %1143 = vadd.xlane.f32.xlu0 %v1142
        %v1144 = vpop.xlane.xlu0 %1143
        %v1145 = vrcp.pop %v1141
        %v1146 = vrcp.pop %v1144
        %v1147 = vmul.f32 %v1136, %v1145
        %v1148 = vmul.f32 %v1138, %v1146
        %v1149 = vpack.c.bf16 %v1147, %v1147
        %v1150 = vpack.c.bf16 %v1148, %v1148
        %v1152 = vunpack.c.l.b16 %v1011
        %v1153 = vpack.c.b16 %v1152, %v1152
        %1154 = vrot.lane.b32.xlu0 %v1153, 120
        %v1155 = vpop.permute.xlu0 %1154
        %v1157 = vsel %vm783, %v1149, 0
        %v1160 = vsel %vm912, %v1155, 0
        %1162 = vmatprep.subr.bf16.mxu0 0
        %1163 = vmatpush1.bf16.msra.mxu0 %v1160
        %1164 = vmatprep.subr.bf16.mxu0 0
        %1165 = vmatpush1.bf16.msra.mxu0 0
        %1166 = vmatprep.subr.bf16.mxu0 0
        %1167 = vmatpush1.bf16.msra.mxu0 0
        %1168 = vmatprep.subr.bf16.mxu0 0
        %1169 = vmatpush1.bf16.msra.mxu0 0
        %1170 = vmatprep.subr.bf16.mxu0 0
        %1171 = vmatpush1.bf16.msra.mxu0 0
        %1172 = vmatprep.subr.bf16.mxu0 0
        %1173 = vmatpush1.bf16.msra.mxu0 0
        %1174 = vmatprep.subr.bf16.mxu0 0
        %1175 = vmatpush1.bf16.msra.mxu0 0
        %1176 = vmatprep.subr.bf16.mxu0 0
        %1177 = vmatpush1.bf16.msra.mxu0 0
        %1178 = vmatprep.subr.bf16.mxu0 0
        %1179 = vmatpush1.bf16.msra.mxu0 0
        %1180 = vmatprep.subr.bf16.mxu0 0
        %1181 = vmatpush1.bf16.msra.mxu0 0
        %1182 = vmatprep.subr.bf16.mxu0 0
        %1183 = vmatpush1.bf16.msra.mxu0 0
        %1184 = vmatprep.subr.bf16.mxu0 0
        %1185 = vmatpush1.bf16.msra.mxu0 0
        %1186 = vmatprep.subr.bf16.mxu0 0
        %1187 = vmatpush1.bf16.msra.mxu0 0
        %1188 = vmatprep.subr.bf16.mxu0 0
        %1189 = vmatpush1.bf16.msra.mxu0 0
        %1190 = vmatprep.subr.bf16.mxu0 0
        %1191 = vmatpush1.bf16.msra.mxu0 0
        %1192 = vmatprep.subr.bf16.mxu0 0
        %1193 = vmatpush1.bf16.msra.mxu0 0
        %1194 = vmatprep.mubr.bf16.mxu0 0
        %1195 = vmatmul.mubr.bf16.gmra.mrb[0].mxu0 %v1157
        %v1196 = vpop.f32.mrb[0].mxu0
        %v1197 = vadd.f32 0.0, %v1196
        %v1198 = vpop.f32.mrb[0].mxu0
        %v1199 = vpop.f32.mrb[0].mxu0
        %v1200 = vpop.f32.mrb[0].mxu0
        %1201 = vdwg.mxu0
        %v1203 = vunpack.c.l.b16 %v1012
        %v1204 = vpack.c.b16 %v1203, %v1203
        %1205 = vrot.lane.b32.xlu0 %v1204, 120
        %v1206 = vpop.permute.xlu0 %1205
        %v1208 = vsel %vm783, %v1150, 0
        %v1211 = vsel %vm912, %v1206, 0
        %1213 = vmatprep.subr.bf16.mxu0 0
        %1214 = vmatpush1.bf16.msra.mxu0 %v1211
        %1215 = vmatprep.subr.bf16.mxu0 0
        %1216 = vmatpush1.bf16.msra.mxu0 0
        %1217 = vmatprep.subr.bf16.mxu0 0
        %1218 = vmatpush1.bf16.msra.mxu0 0
        %1219 = vmatprep.subr.bf16.mxu0 0
        %1220 = vmatpush1.bf16.msra.mxu0 0
        %1221 = vmatprep.subr.bf16.mxu0 0
        %1222 = vmatpush1.bf16.msra.mxu0 0
        %1223 = vmatprep.subr.bf16.mxu0 0
        %1224 = vmatpush1.bf16.msra.mxu0 0
        %1225 = vmatprep.subr.bf16.mxu0 0
        %1226 = vmatpush1.bf16.msra.mxu0 0
        %1227 = vmatprep.subr.bf16.mxu0 0
        %1228 = vmatpush1.bf16.msra.mxu0 0
        %1229 = vmatprep.subr.bf16.mxu0 0
        %1230 = vmatpush1.bf16.msra.mxu0 0
        %1231 = vmatprep.subr.bf16.mxu0 0
        %1232 = vmatpush1.bf16.msra.mxu0 0
        %1233 = vmatprep.subr.bf16.mxu0 0
        %1234 = vmatpush1.bf16.msra.mxu0 0
        %1235 = vmatprep.subr.bf16.mxu0 0
        %1236 = vmatpush1.bf16.msra.mxu0 0
        %1237 = vmatprep.subr.bf16.mxu0 0
        %1238 = vmatpush1.bf16.msra.mxu0 0
        %1239 = vmatprep.subr.bf16.mxu0 0
        %1240 = vmatpush1.bf16.msra.mxu0 0
        %1241 = vmatprep.subr.bf16.mxu0 0
        %1242 = vmatpush1.bf16.msra.mxu0 0
        %1243 = vmatprep.subr.bf16.mxu0 0
        %1244 = vmatpush1.bf16.msra.mxu0 0
        %1245 = vmatprep.mubr.bf16.mxu0 0
        %1246 = vmatmul.mubr.bf16.gmra.mrb[0].mxu0 %v1208
        %v1247 = vpop.f32.mrb[0].mxu0
        %v1248 = vadd.f32 0.0, %v1247
        %v1249 = vpop.f32.mrb[0].mxu0
        %v1250 = vpop.f32.mrb[0].mxu0
        %v1251 = vpop.f32.mrb[0].mxu0
        %1252 = vdwg.mxu0
        %v1253 = vpack.c.bf16 %v1197, %v1197
        %v1254 = vpack.c.bf16 %v1248, %v1248
        %v1257 = vunpack.c.l.b16 %v1253
        %v1258 = vunpack.c.l.b16 %v1254
        %v1259 = vpack.c.b16 %v1257, %v1257
        %v1260 = vpack.c.b16 %v1258, %v1258
        %1261 = vrot.lane.b32.xlu0 %v1259, 8
        %v1262 = vpop.permute.xlu0 %1261
        %1263 = vrot.lane.b32.xlu0 %v1260, 8
        %v1264 = vpop.permute.xlu0 %1263
        %vm1267 = vcmask 126016
        %1268 = vst.msk [vmem:[#allocation5] sm:$0xf] %vm1267, %v1262
        %1269 = vst.msk [vmem:[#allocation5 + $0x4] sm:$0xf] %vm1267, %v1264
        %v1270 = vld [vmem:[#allocation2] sm:$0xf]
        %v1271 = vld [vmem:[#allocation2 + $0x4] sm:$0xf]
        %v1272 = vld [vmem:[#allocation3] sm:$0xf]
        %v1273 = vld [vmem:[#allocation3 + $0x4] sm:$0xf]
        %v1274 = vld [vmem:[#allocation4] sm:$0xf]
        %v1275 = vld [vmem:[#allocation4 + $0x4] sm:$0xf]
        %v1277 = vunpack.c.l.b16 %v1270
        %v1278 = vpack.c.b16 %v1277, %v1277
        %1279 = vrot.lane.b32.xlu0 %v1278, 112
        %v1280 = vpop.permute.xlu0 %1279
        %v1282 = vunpack.c.l.b16 %v1272
        %v1283 = vpack.c.b16 %v1282, %v1282
        %1284 = vrot.lane.b32.xlu0 %v1283, 112
        %v1285 = vpop.permute.xlu0 %1284
        %v1287 = vsel %vm783, %v1280, 0
        %v1290 = vsel %vm783, %v1285, 0
        %1292 = vmatprep.subr.bf16.mxu0 0
        %1293 = vmatpush1.bf16.xpose.msra.mxu0 %v1290
        %1294 = vmatprep.subr.bf16.mxu0 0
        %1295 = vmatpush1.bf16.xpose.msra.mxu0 0
        %1296 = vmatprep.subr.bf16.mxu0 0
        %1297 = vmatpush1.bf16.xpose.msra.mxu0 0
        %1298 = vmatprep.subr.bf16.mxu0 0
        %1299 = vmatpush1.bf16.xpose.msra.mxu0 0
        %1300 = vmatprep.subr.bf16.mxu0 0
        %1301 = vmatpush1.bf16.xpose.msra.mxu0 0
        %1302 = vmatprep.subr.bf16.mxu0 0
        %1303 = vmatpush1.bf16.xpose.msra.mxu0 0
        %1304 = vmatprep.subr.bf16.mxu0 0
        %1305 = vmatpush1.bf16.xpose.msra.mxu0 0
        %1306 = vmatprep.subr.bf16.mxu0 0
        %1307 = vmatpush1.bf16.xpose.msra.mxu0 0
        %1308 = vmatprep.subr.bf16.mxu0 0
        %1309 = vmatpush1.bf16.xpose.msra.mxu0 0
        %1310 = vmatprep.subr.bf16.mxu0 0
        %1311 = vmatpush1.bf16.xpose.msra.mxu0 0
        %1312 = vmatprep.subr.bf16.mxu0 0
        %1313 = vmatpush1.bf16.xpose.msra.mxu0 0
        %1314 = vmatprep.subr.bf16.mxu0 0
        %1315 = vmatpush1.bf16.xpose.msra.mxu0 0
        %1316 = vmatprep.subr.bf16.mxu0 0
        %1317 = vmatpush1.bf16.xpose.msra.mxu0 0
        %1318 = vmatprep.subr.bf16.mxu0 0
        %1319 = vmatpush1.bf16.xpose.msra.mxu0 0
        %1320 = vmatprep.subr.bf16.mxu0 0
        %1321 = vmatpush1.bf16.xpose.msra.mxu0 0
        %1322 = vmatprep.subr.bf16.mxu0 0
        %1323 = vmatpush1.bf16.xpose.msra.mxu0 0
        %1324 = vmatprep.mubr.bf16.mxu0 0
        %1325 = vmatmul.mubr.bf16.gmra.mrb[0].mxu0 %v1287
        %v1326 = vpop.f32.mrb[0].mxu0
        %v1327 = vadd.f32 %v776, %v1326
        %v1328 = vpop.f32.mrb[0].mxu0
        %v1329 = vpop.f32.mrb[0].mxu0
        %v1330 = vpop.f32.mrb[0].mxu0
        %1331 = vdwg.mxu0
        %v1333 = vunpack.c.l.b16 %v1271
        %v1334 = vpack.c.b16 %v1333, %v1333
        %1335 = vrot.lane.b32.xlu0 %v1334, 112
        %v1336 = vpop.permute.xlu0 %1335
        %v1338 = vunpack.c.l.b16 %v1273
        %v1339 = vpack.c.b16 %v1338, %v1338
        %1340 = vrot.lane.b32.xlu0 %v1339, 112
        %v1341 = vpop.permute.xlu0 %1340
        %v1343 = vsel %vm783, %v1336, 0
        %v1346 = vsel %vm783, %v1341, 0
        %1348 = vmatprep.subr.bf16.mxu0 0
        %1349 = vmatpush1.bf16.xpose.msra.mxu0 %v1346
        %1350 = vmatprep.subr.bf16.mxu0 0
        %1351 = vmatpush1.bf16.xpose.msra.mxu0 0
        %1352 = vmatprep.subr.bf16.mxu0 0
        %1353 = vmatpush1.bf16.xpose.msra.mxu0 0
        %1354 = vmatprep.subr.bf16.mxu0 0
        %1355 = vmatpush1.bf16.xpose.msra.mxu0 0
        %1356 = vmatprep.subr.bf16.mxu0 0
        %1357 = vmatpush1.bf16.xpose.msra.mxu0 0
        %1358 = vmatprep.subr.bf16.mxu0 0
        %1359 = vmatpush1.bf16.xpose.msra.mxu0 0
        %1360 = vmatprep.subr.bf16.mxu0 0
        %1361 = vmatpush1.bf16.xpose.msra.mxu0 0
        %1362 = vmatprep.subr.bf16.mxu0 0
        %1363 = vmatpush1.bf16.xpose.msra.mxu0 0
        %1364 = vmatprep.subr.bf16.mxu0 0
        %1365 = vmatpush1.bf16.xpose.msra.mxu0 0
        %1366 = vmatprep.subr.bf16.mxu0 0
        %1367 = vmatpush1.bf16.xpose.msra.mxu0 0
        %1368 = vmatprep.subr.bf16.mxu0 0
        %1369 = vmatpush1.bf16.xpose.msra.mxu0 0
        %1370 = vmatprep.subr.bf16.mxu0 0
        %1371 = vmatpush1.bf16.xpose.msra.mxu0 0
        %1372 = vmatprep.subr.bf16.mxu0 0
        %1373 = vmatpush1.bf16.xpose.msra.mxu0 0
        %1374 = vmatprep.subr.bf16.mxu0 0
        %1375 = vmatpush1.bf16.xpose.msra.mxu0 0
        %1376 = vmatprep.subr.bf16.mxu0 0
        %1377 = vmatpush1.bf16.xpose.msra.mxu0 0
        %1378 = vmatprep.subr.bf16.mxu0 0
        %1379 = vmatpush1.bf16.xpose.msra.mxu0 0
        %1380 = vmatprep.mubr.bf16.mxu0 0
        %1381 = vmatmul.mubr.bf16.gmra.mrb[0].mxu0 %v1343
        %v1382 = vpop.f32.mrb[0].mxu0
        %v1383 = vadd.f32 %v780, %v1382
        %v1384 = vpop.f32.mrb[0].mxu0
        %v1385 = vpop.f32.mrb[0].mxu0
        %v1386 = vpop.f32.mrb[0].mxu0
        %1387 = vdwg.mxu0
        %v1388 = vsel %vm882, %v1327, -1e+09
        %v1389 = vsel %vm882, %v1383, -1e+09
        %v1390 = vsel %vm783, %v1388, -inf
        %1391 = vmax.xlane.f32.xlu0 %v1390
        %v1392 = vpop.xlane.xlu0 %1391
        %v1393 = vsel %vm783, %v1389, -inf
        %1394 = vmax.xlane.f32.xlu0 %v1393
        %v1395 = vpop.xlane.xlu0 %1394
        %v1396 = vsub.f32 %v1388, %v1392
        %v1397 = vsub.f32 %v1389, %v1395
        %v1398 = vmul.f32 %v1396, 1.442695
        %v1399 = vpow.pop %v1398
        %v1400 = vmul.f32 %v1397, 1.442695
        %v1401 = vpow.pop %v1400
        %v1402 = vsel %vm783, %v1399, 0.0
        %1403 = vadd.xlane.f32.xlu0 %v1402
        %v1404 = vpop.xlane.xlu0 %1403
        %v1405 = vsel %vm783, %v1401, 0.0
        %1406 = vadd.xlane.f32.xlu0 %v1405
        %v1407 = vpop.xlane.xlu0 %1406
        %v1408 = vrcp.pop %v1404
        %v1409 = vrcp.pop %v1407
        %v1410 = vmul.f32 %v1399, %v1408
        %v1411 = vmul.f32 %v1401, %v1409
        %v1412 = vpack.c.bf16 %v1410, %v1410
        %v1413 = vpack.c.bf16 %v1411, %v1411
        %v1415 = vunpack.c.l.b16 %v1274
        %v1416 = vpack.c.b16 %v1415, %v1415
        %1417 = vrot.lane.b32.xlu0 %v1416, 112
        %v1418 = vpop.permute.xlu0 %1417
        %v1420 = vsel %vm783, %v1412, 0
        %v1423 = vsel %vm912, %v1418, 0
        %1425 = vmatprep.subr.bf16.mxu0 0
        %1426 = vmatpush1.bf16.msra.mxu0 %v1423
        %1427 = vmatprep.subr.bf16.mxu0 0
        %1428 = vmatpush1.bf16.msra.mxu0 0
        %1429 = vmatprep.subr.bf16.mxu0 0
        %1430 = vmatpush1.bf16.msra.mxu0 0
        %1431 = vmatprep.subr.bf16.mxu0 0
        %1432 = vmatpush1.bf16.msra.mxu0 0
        %1433 = vmatprep.subr.bf16.mxu0 0
        %1434 = vmatpush1.bf16.msra.mxu0 0
        %1435 = vmatprep.subr.bf16.mxu0 0
        %1436 = vmatpush1.bf16.msra.mxu0 0
        %1437 = vmatprep.subr.bf16.mxu0 0
        %1438 = vmatpush1.bf16.msra.mxu0 0
        %1439 = vmatprep.subr.bf16.mxu0 0
        %1440 = vmatpush1.bf16.msra.mxu0 0
        %1441 = vmatprep.subr.bf16.mxu0 0
        %1442 = vmatpush1.bf16.msra.mxu0 0
        %1443 = vmatprep.subr.bf16.mxu0 0
        %1444 = vmatpush1.bf16.msra.mxu0 0
        %1445 = vmatprep.subr.bf16.mxu0 0
        %1446 = vmatpush1.bf16.msra.mxu0 0
        %1447 = vmatprep.subr.bf16.mxu0 0
        %1448 = vmatpush1.bf16.msra.mxu0 0
        %1449 = vmatprep.subr.bf16.mxu0 0
        %1450 = vmatpush1.bf16.msra.mxu0 0
        %1451 = vmatprep.subr.bf16.mxu0 0
        %1452 = vmatpush1.bf16.msra.mxu0 0
        %1453 = vmatprep.subr.bf16.mxu0 0
        %1454 = vmatpush1.bf16.msra.mxu0 0
        %1455 = vmatprep.subr.bf16.mxu0 0
        %1456 = vmatpush1.bf16.msra.mxu0 0
        %1457 = vmatprep.mubr.bf16.mxu0 0
        %1458 = vmatmul.mubr.bf16.gmra.mrb[0].mxu0 %v1420
        %v1459 = vpop.f32.mrb[0].mxu0
        %v1460 = vadd.f32 0.0, %v1459
        %v1461 = vpop.f32.mrb[0].mxu0
        %v1462 = vpop.f32.mrb[0].mxu0
        %v1463 = vpop.f32.mrb[0].mxu0
        %1464 = vdwg.mxu0
        %v1466 = vunpack.c.l.b16 %v1275
        %v1467 = vpack.c.b16 %v1466, %v1466
        %1468 = vrot.lane.b32.xlu0 %v1467, 112
        %v1469 = vpop.permute.xlu0 %1468
        %v1471 = vsel %vm783, %v1413, 0
        %v1474 = vsel %vm912, %v1469, 0
        %1476 = vmatprep.subr.bf16.mxu0 0
        %1477 = vmatpush1.bf16.msra.mxu0 %v1474
        %1478 = vmatprep.subr.bf16.mxu0 0
        %1479 = vmatpush1.bf16.msra.mxu0 0
        %1480 = vmatprep.subr.bf16.mxu0 0
        %1481 = vmatpush1.bf16.msra.mxu0 0
        %1482 = vmatprep.subr.bf16.mxu0 0
        %1483 = vmatpush1.bf16.msra.mxu0 0
        %1484 = vmatprep.subr.bf16.mxu0 0
        %1485 = vmatpush1.bf16.msra.mxu0 0
        %1486 = vmatprep.subr.bf16.mxu0 0
        %1487 = vmatpush1.bf16.msra.mxu0 0
        %1488 = vmatprep.subr.bf16.mxu0 0
        %1489 = vmatpush1.bf16.msra.mxu0 0
        %1490 = vmatprep.subr.bf16.mxu0 0
        %1491 = vmatpush1.bf16.msra.mxu0 0
        %1492 = vmatprep.subr.bf16.mxu0 0
        %1493 = vmatpush1.bf16.msra.mxu0 0
        %1494 = vmatprep.subr.bf16.mxu0 0
        %1495 = vmatpush1.bf16.msra.mxu0 0
        %1496 = vmatprep.subr.bf16.mxu0 0
        %1497 = vmatpush1.bf16.msra.mxu0 0
        %1498 = vmatprep.subr.bf16.mxu0 0
        %1499 = vmatpush1.bf16.msra.mxu0 0
        %1500 = vmatprep.subr.bf16.mxu0 0
        %1501 = vmatpush1.bf16.msra.mxu0 0
        %1502 = vmatprep.subr.bf16.mxu0 0
        %1503 = vmatpush1.bf16.msra.mxu0 0
        %1504 = vmatprep.subr.bf16.mxu0 0
        %1505 = vmatpush1.bf16.msra.mxu0 0
        %1506 = vmatprep.subr.bf16.mxu0 0
        %1507 = vmatpush1.bf16.msra.mxu0 0
        %1508 = vmatprep.mubr.bf16.mxu0 0
        %1509 = vmatmul.mubr.bf16.gmra.mrb[0].mxu0 %v1471
        %v1510 = vpop.f32.mrb[0].mxu0
        %v1511 = vadd.f32 0.0, %v1510
        %v1512 = vpop.f32.mrb[0].mxu0
        %v1513 = vpop.f32.mrb[0].mxu0
        %v1514 = vpop.f32.mrb[0].mxu0
        %1515 = vdwg.mxu0
        %v1516 = vpack.c.bf16 %v1460, %v1460
        %v1517 = vpack.c.bf16 %v1511, %v1511
        %v1520 = vunpack.c.l.b16 %v1516
        %v1521 = vunpack.c.l.b16 %v1517
        %v1522 = vpack.c.b16 %v1520, %v1520
        %v1523 = vpack.c.b16 %v1521, %v1521
        %1524 = vrot.lane.b32.xlu0 %v1522, 16
        %v1525 = vpop.permute.xlu0 %1524
        %1526 = vrot.lane.b32.xlu0 %v1523, 16
        %v1527 = vpop.permute.xlu0 %1526
        %vm1530 = vcmask 191616
        %1531 = vst.msk [vmem:[#allocation5] sm:$0xf] %vm1530, %v1525
        %1532 = vst.msk [vmem:[#allocation5 + $0x4] sm:$0xf] %vm1530, %v1527
        %v1533 = vld [vmem:[#allocation2] sm:$0xf]
        %v1534 = vld [vmem:[#allocation2 + $0x4] sm:$0xf]
        %v1535 = vld [vmem:[#allocation3] sm:$0xf]
        %v1536 = vld [vmem:[#allocation3 + $0x4] sm:$0xf]
        %v1537 = vld [vmem:[#allocation4] sm:$0xf]
        %v1538 = vld [vmem:[#allocation4 + $0x4] sm:$0xf]
        %v1540 = vunpack.c.l.b16 %v1533
        %v1541 = vpack.c.b16 %v1540, %v1540
        %1542 = vrot.lane.b32.xlu0 %v1541, 104
        %v1543 = vpop.permute.xlu0 %1542
        %v1545 = vunpack.c.l.b16 %v1535
        %v1546 = vpack.c.b16 %v1545, %v1545
        %1547 = vrot.lane.b32.xlu0 %v1546, 104
        %v1548 = vpop.permute.xlu0 %1547
        %v1550 = vsel %vm783, %v1543, 0
        %v1553 = vsel %vm783, %v1548, 0
        %1555 = vmatprep.subr.bf16.mxu0 0
        %1556 = vmatpush1.bf16.xpose.msra.mxu0 %v1553
        %1557 = vmatprep.subr.bf16.mxu0 0
        %1558 = vmatpush1.bf16.xpose.msra.mxu0 0
        %1559 = vmatprep.subr.bf16.mxu0 0
        %1560 = vmatpush1.bf16.xpose.msra.mxu0 0
        %1561 = vmatprep.subr.bf16.mxu0 0
        %1562 = vmatpush1.bf16.xpose.msra.mxu0 0
        %1563 = vmatprep.subr.bf16.mxu0 0
        %1564 = vmatpush1.bf16.xpose.msra.mxu0 0
        %1565 = vmatprep.subr.bf16.mxu0 0
        %1566 = vmatpush1.bf16.xpose.msra.mxu0 0
        %1567 = vmatprep.subr.bf16.mxu0 0
        %1568 = vmatpush1.bf16.xpose.msra.mxu0 0
        %1569 = vmatprep.subr.bf16.mxu0 0
        %1570 = vmatpush1.bf16.xpose.msra.mxu0 0
        %1571 = vmatprep.subr.bf16.mxu0 0
        %1572 = vmatpush1.bf16.xpose.msra.mxu0 0
        %1573 = vmatprep.subr.bf16.mxu0 0
        %1574 = vmatpush1.bf16.xpose.msra.mxu0 0
        %1575 = vmatprep.subr.bf16.mxu0 0
        %1576 = vmatpush1.bf16.xpose.msra.mxu0 0
        %1577 = vmatprep.subr.bf16.mxu0 0
        %1578 = vmatpush1.bf16.xpose.msra.mxu0 0
        %1579 = vmatprep.subr.bf16.mxu0 0
        %1580 = vmatpush1.bf16.xpose.msra.mxu0 0
        %1581 = vmatprep.subr.bf16.mxu0 0
        %1582 = vmatpush1.bf16.xpose.msra.mxu0 0
        %1583 = vmatprep.subr.bf16.mxu0 0
        %1584 = vmatpush1.bf16.xpose.msra.mxu0 0
        %1585 = vmatprep.subr.bf16.mxu0 0
        %1586 = vmatpush1.bf16.xpose.msra.mxu0 0
        %1587 = vmatprep.mubr.bf16.mxu0 0
        %1588 = vmatmul.mubr.bf16.gmra.mrb[0].mxu0 %v1550
        %v1589 = vpop.f32.mrb[0].mxu0
        %v1590 = vadd.f32 %v776, %v1589
        %v1591 = vpop.f32.mrb[0].mxu0
        %v1592 = vpop.f32.mrb[0].mxu0
        %v1593 = vpop.f32.mrb[0].mxu0
        %1594 = vdwg.mxu0
        %v1596 = vunpack.c.l.b16 %v1534
        %v1597 = vpack.c.b16 %v1596, %v1596
        %1598 = vrot.lane.b32.xlu0 %v1597, 104
        %v1599 = vpop.permute.xlu0 %1598
        %v1601 = vunpack.c.l.b16 %v1536
        %v1602 = vpack.c.b16 %v1601, %v1601
        %1603 = vrot.lane.b32.xlu0 %v1602, 104
        %v1604 = vpop.permute.xlu0 %1603
        %v1606 = vsel %vm783, %v1599, 0
        %v1609 = vsel %vm783, %v1604, 0
        %1611 = vmatprep.subr.bf16.mxu0 0
        %1612 = vmatpush1.bf16.xpose.msra.mxu0 %v1609
        %1613 = vmatprep.subr.bf16.mxu0 0
        %1614 = vmatpush1.bf16.xpose.msra.mxu0 0
        %1615 = vmatprep.subr.bf16.mxu0 0
        %1616 = vmatpush1.bf16.xpose.msra.mxu0 0
        %1617 = vmatprep.subr.bf16.mxu0 0
        %1618 = vmatpush1.bf16.xpose.msra.mxu0 0
        %1619 = vmatprep.subr.bf16.mxu0 0
        %1620 = vmatpush1.bf16.xpose.msra.mxu0 0
        %1621 = vmatprep.subr.bf16.mxu0 0
        %1622 = vmatpush1.bf16.xpose.msra.mxu0 0
        %1623 = vmatprep.subr.bf16.mxu0 0
        %1624 = vmatpush1.bf16.xpose.msra.mxu0 0
        %1625 = vmatprep.subr.bf16.mxu0 0
        %1626 = vmatpush1.bf16.xpose.msra.mxu0 0
        %1627 = vmatprep.subr.bf16.mxu0 0
        %1628 = vmatpush1.bf16.xpose.msra.mxu0 0
        %1629 = vmatprep.subr.bf16.mxu0 0
        %1630 = vmatpush1.bf16.xpose.msra.mxu0 0
        %1631 = vmatprep.subr.bf16.mxu0 0
        %1632 = vmatpush1.bf16.xpose.msra.mxu0 0
        %1633 = vmatprep.subr.bf16.mxu0 0
        %1634 = vmatpush1.bf16.xpose.msra.mxu0 0
        %1635 = vmatprep.subr.bf16.mxu0 0
        %1636 = vmatpush1.bf16.xpose.msra.mxu0 0
        %1637 = vmatprep.subr.bf16.mxu0 0
        %1638 = vmatpush1.bf16.xpose.msra.mxu0 0
        %1639 = vmatprep.subr.bf16.mxu0 0
        %1640 = vmatpush1.bf16.xpose.msra.mxu0 0
        %1641 = vmatprep.subr.bf16.mxu0 0
        %1642 = vmatpush1.bf16.xpose.msra.mxu0 0
        %1643 = vmatprep.mubr.bf16.mxu0 0
        %1644 = vmatmul.mubr.bf16.gmra.mrb[0].mxu0 %v1606
        %v1645 = vpop.f32.mrb[0].mxu0
        %v1646 = vadd.f32 %v780, %v1645
        %v1647 = vpop.f32.mrb[0].mxu0
        %v1648 = vpop.f32.mrb[0].mxu0
        %v1649 = vpop.f32.mrb[0].mxu0
        %1650 = vdwg.mxu0
        %v1651 = vsel %vm882, %v1590, -1e+09
        %v1652 = vsel %vm882, %v1646, -1e+09
        %v1653 = vsel %vm783, %v1651, -inf
        %1654 = vmax.xlane.f32.xlu0 %v1653
        %v1655 = vpop.xlane.xlu0 %1654
        %v1656 = vsel %vm783, %v1652, -inf
        %1657 = vmax.xlane.f32.xlu0 %v1656
        %v1658 = vpop.xlane.xlu0 %1657
        %v1659 = vsub.f32 %v1651, %v1655
        %v1660 = vsub.f32 %v1652, %v1658
        %v1661 = vmul.f32 %v1659, 1.442695
        %v1662 = vpow.pop %v1661
        %v1663 = vmul.f32 %v1660, 1.442695
        %v1664 = vpow.pop %v1663
        %v1665 = vsel %vm783, %v1662, 0.0
        %1666 = vadd.xlane.f32.xlu0 %v1665
        %v1667 = vpop.xlane.xlu0 %1666
        %v1668 = vsel %vm783, %v1664, 0.0
        %1669 = vadd.xlane.f32.xlu0 %v1668
        %v1670 = vpop.xlane.xlu0 %1669
        %v1671 = vrcp.pop %v1667
        %v1672 = vrcp.pop %v1670
        %v1673 = vmul.f32 %v1662, %v1671
        %v1674 = vmul.f32 %v1664, %v1672
        %v1675 = vpack.c.bf16 %v1673, %v1673
        %v1676 = vpack.c.bf16 %v1674, %v1674
        %v1678 = vunpack.c.l.b16 %v1537
        %v1679 = vpack.c.b16 %v1678, %v1678
        %1680 = vrot.lane.b32.xlu0 %v1679, 104
        %v1681 = vpop.permute.xlu0 %1680
        %v1683 = vsel %vm783, %v1675, 0
        %v1686 = vsel %vm912, %v1681, 0
        %1688 = vmatprep.subr.bf16.mxu0 0
        %1689 = vmatpush1.bf16.msra.mxu0 %v1686
        %1690 = vmatprep.subr.bf16.mxu0 0
        %1691 = vmatpush1.bf16.msra.mxu0 0
        %1692 = vmatprep.subr.bf16.mxu0 0
        %1693 = vmatpush1.bf16.msra.mxu0 0
        %1694 = vmatprep.subr.bf16.mxu0 0
        %1695 = vmatpush1.bf16.msra.mxu0 0
        %1696 = vmatprep.subr.bf16.mxu0 0
        %1697 = vmatpush1.bf16.msra.mxu0 0
        %1698 = vmatprep.subr.bf16.mxu0 0
        %1699 = vmatpush1.bf16.msra.mxu0 0
        %1700 = vmatprep.subr.bf16.mxu0 0
        %1701 = vmatpush1.bf16.msra.mxu0 0
        %1702 = vmatprep.subr.bf16.mxu0 0
        %1703 = vmatpush1.bf16.msra.mxu0 0
        %1704 = vmatprep.subr.bf16.mxu0 0
        %1705 = vmatpush1.bf16.msra.mxu0 0
        %1706 = vmatprep.subr.bf16.mxu0 0
        %1707 = vmatpush1.bf16.msra.mxu0 0
        %1708 = vmatprep.subr.bf16.mxu0 0
        %1709 = vmatpush1.bf16.msra.mxu0 0
        %1710 = vmatprep.subr.bf16.mxu0 0
        %1711 = vmatpush1.bf16.msra.mxu0 0
        %1712 = vmatprep.subr.bf16.mxu0 0
        %1713 = vmatpush1.bf16.msra.mxu0 0
        %1714 = vmatprep.subr.bf16.mxu0 0
        %1715 = vmatpush1.bf16.msra.mxu0 0
        %1716 = vmatprep.subr.bf16.mxu0 0
        %1717 = vmatpush1.bf16.msra.mxu0 0
        %1718 = vmatprep.subr.bf16.mxu0 0
        %1719 = vmatpush1.bf16.msra.mxu0 0
        %1720 = vmatprep.mubr.bf16.mxu0 0
        %1721 = vmatmul.mubr.bf16.gmra.mrb[0].mxu0 %v1683
        %v1722 = vpop.f32.mrb[0].mxu0
        %v1723 = vadd.f32 0.0, %v1722
        %v1724 = vpop.f32.mrb[0].mxu0
        %v1725 = vpop.f32.mrb[0].mxu0
        %v1726 = vpop.f32.mrb[0].mxu0
        %1727 = vdwg.mxu0
        %v1729 = vunpack.c.l.b16 %v1538
        %v1730 = vpack.c.b16 %v1729, %v1729
        %1731 = vrot.lane.b32.xlu0 %v1730, 104
        %v1732 = vpop.permute.xlu0 %1731
        %v1734 = vsel %vm783, %v1676, 0
        %v1737 = vsel %vm912, %v1732, 0
        %1739 = vmatprep.subr.bf16.mxu0 0
        %1740 = vmatpush1.bf16.msra.mxu0 %v1737
        %1741 = vmatprep.subr.bf16.mxu0 0
        %1742 = vmatpush1.bf16.msra.mxu0 0
        %1743 = vmatprep.subr.bf16.mxu0 0
        %1744 = vmatpush1.bf16.msra.mxu0 0
        %1745 = vmatprep.subr.bf16.mxu0 0
        %1746 = vmatpush1.bf16.msra.mxu0 0
        %1747 = vmatprep.subr.bf16.mxu0 0
        %1748 = vmatpush1.bf16.msra.mxu0 0
        %1749 = vmatprep.subr.bf16.mxu0 0
        %1750 = vmatpush1.bf16.msra.mxu0 0
        %1751 = vmatprep.subr.bf16.mxu0 0
        %1752 = vmatpush1.bf16.msra.mxu0 0
        %1753 = vmatprep.subr.bf16.mxu0 0
        %1754 = vmatpush1.bf16.msra.mxu0 0
        %1755 = vmatprep.subr.bf16.mxu0 0
        %1756 = vmatpush1.bf16.msra.mxu0 0
        %1757 = vmatprep.subr.bf16.mxu0 0
        %1758 = vmatpush1.bf16.msra.mxu0 0
        %1759 = vmatprep.subr.bf16.mxu0 0
        %1760 = vmatpush1.bf16.msra.mxu0 0
        %1761 = vmatprep.subr.bf16.mxu0 0
        %1762 = vmatpush1.bf16.msra.mxu0 0
        %1763 = vmatprep.subr.bf16.mxu0 0
        %1764 = vmatpush1.bf16.msra.mxu0 0
        %1765 = vmatprep.subr.bf16.mxu0 0
        %1766 = vmatpush1.bf16.msra.mxu0 0
        %1767 = vmatprep.subr.bf16.mxu0 0
        %1768 = vmatpush1.bf16.msra.mxu0 0
        %1769 = vmatprep.subr.bf16.mxu0 0
        %1770 = vmatpush1.bf16.msra.mxu0 0
        %1771 = vmatprep.mubr.bf16.mxu0 0
        %1772 = vmatmul.mubr.bf16.gmra.mrb[0].mxu0 %v1734
        %v1773 = vpop.f32.mrb[0].mxu0
        %v1774 = vadd.f32 0.0, %v1773
        %v1775 = vpop.f32.mrb[0].mxu0
        %v1776 = vpop.f32.mrb[0].mxu0
        %v1777 = vpop.f32.mrb[0].mxu0
        %1778 = vdwg.mxu0
        %v1779 = vpack.c.bf16 %v1723, %v1723
        %v1780 = vpack.c.bf16 %v1774, %v1774
        %v1783 = vunpack.c.l.b16 %v1779
        %v1784 = vunpack.c.l.b16 %v1780
        %v1785 = vpack.c.b16 %v1783, %v1783
        %v1786 = vpack.c.b16 %v1784, %v1784
        %1787 = vrot.lane.b32.xlu0 %v1785, 24
        %v1788 = vpop.permute.xlu0 %1787
        %1789 = vrot.lane.b32.xlu0 %v1786, 24
        %v1790 = vpop.permute.xlu0 %1789
        %vm1793 = vcmask 257216
        %1794 = vst.msk [vmem:[#allocation5] sm:$0xf] %vm1793, %v1788
        %1795 = vst.msk [vmem:[#allocation5 + $0x4] sm:$0xf] %vm1793, %v1790
        %v1796 = vld [vmem:[#allocation5] sm:$0xf]
        %v1797 = vld [vmem:[#allocation5 + $0x4] sm:$0xf]
        %v1798 = vld [vmem:[%s495] sm:$0xf]
        %v1799 = vld [vmem:[%s495 + $0x4] sm:$0xf]
        %v1800 = vld [vmem:[%s495 + $0x8] sm:$0xf]
        %v1801 = vld [vmem:[%s495 + $0xc] sm:$0xf]
        %v1802 = vlaneseq
        %v1803 = vshrl.u32 %v1802, 7
        %v1804 = vsub.s32 3, %v1803
        %v1805 = vrot.slane %v633, %v1804
        %v1808 = vunpack.c.l.b16 %v1796
        %v1809 = vunpack.c.l.b16 %v1797
        %v1810 = vpack.c.b16 %v1809, %v1808
        %v1815 = vunpack.c.l.b16 %v1798
        %v1816 = vunpack.c.l.b16 %v1799
        %v1817 = vunpack.c.l.b16 %v1800
        %v1818 = vunpack.c.l.b16 %v1801
        %v1819 = vpack.c.b16 %v1816, %v1815
        %v1820 = vpack.c.b16 %v1818, %v1817
        %v1824 = vsel %vm651, %v1810, 0
        %1826 = vmatprep.subr.bf16.mxu0 0
        %1827 = vmatpush1.bf16.msra.mxu0 %v1819
        %1828 = vmatprep.subr.bf16.mxu0 0
        %1829 = vmatpush1.bf16.msra.mxu0 %v1820
        %1830 = vmatprep.subr.bf16.mxu0 0
        %1831 = vmatpush1.bf16.msra.mxu0 0
        %1832 = vmatprep.subr.bf16.mxu0 0
        %1833 = vmatpush1.bf16.msra.mxu0 0
        %1834 = vmatprep.subr.bf16.mxu0 0
        %1835 = vmatpush1.bf16.msra.mxu0 0
        %1836 = vmatprep.subr.bf16.mxu0 0
        %1837 = vmatpush1.bf16.msra.mxu0 0
        %1838 = vmatprep.subr.bf16.mxu0 0
        %1839 = vmatpush1.bf16.msra.mxu0 0
        %1840 = vmatprep.subr.bf16.mxu0 0
        %1841 = vmatpush1.bf16.msra.mxu0 0
        %1842 = vmatprep.subr.bf16.mxu0 0
        %1843 = vmatpush1.bf16.msra.mxu0 0
        %1844 = vmatprep.subr.bf16.mxu0 0
        %1845 = vmatpush1.bf16.msra.mxu0 0
        %1846 = vmatprep.subr.bf16.mxu0 0
        %1847 = vmatpush1.bf16.msra.mxu0 0
        %1848 = vmatprep.subr.bf16.mxu0 0
        %1849 = vmatpush1.bf16.msra.mxu0 0
        %1850 = vmatprep.subr.bf16.mxu0 0
        %1851 = vmatpush1.bf16.msra.mxu0 0
        %1852 = vmatprep.subr.bf16.mxu0 0
        %1853 = vmatpush1.bf16.msra.mxu0 0
        %1854 = vmatprep.subr.bf16.mxu0 0
        %1855 = vmatpush1.bf16.msra.mxu0 0
        %1856 = vmatprep.subr.bf16.mxu0 0
        %1857 = vmatpush1.bf16.msra.mxu0 0
        %1858 = vmatprep.mubr.bf16.mxu0 0
        %1859 = vmatmul.mubr.bf16.gmra.mrb[0].mxu0 %v1824
        %v1860 = vpop.f32.mrb[0].mxu0
        %v1861 = vadd.f32 %v1805, %v1860
        %v1862 = vpop.f32.mrb[0].mxu0
        %v1863 = vpop.f32.mrb[0].mxu0
        %v1864 = vadd.f32 %v1805, %v1863
        %v1865 = vpop.f32.mrb[0].mxu0
        %1866 = vdwg.mxu0
        %v1867 = vadd.f32 %v630, %v1861
        %v1868 = vadd.f32 %v631, %v1864
        %v1869 = vsel %vm651, %v1867, 0.0
        %1870 = vadd.xlane.f32.xlu0 %v1869
        %v1871 = vpop.xlane.xlu0 %1870
        %v1872 = vsel %vm651, %v1868, 0.0
        %1873 = vadd.xlane.f32.xlu0 %v1872
        %v1874 = vpop.xlane.xlu0 %1873
        %v1875 = vrcp.pop 32.0
        %v1876 = vmul.f32 %v1871, %v1875
        %v1877 = vmul.f32 %v1874, %v1875
        %v1878 = vsub.f32 %v1867, %v1876
        %v1879 = vsub.f32 %v1868, %v1877
        %v1880 = vmul.f32 %v1878, %v1878
        %v1881 = vmul.f32 %v1879, %v1879
        %v1882 = vsel %vm651, %v1880, 0.0
        %1883 = vadd.xlane.f32.xlu0 %v1882
        %v1884 = vpop.xlane.xlu0 %1883
        %v1885 = vsel %vm651, %v1881, 0.0
        %1886 = vadd.xlane.f32.xlu0 %v1885
        %v1887 = vpop.xlane.xlu0 %1886
        %v1888 = vmul.f32 %v1884, %v1875
        %v1889 = vmul.f32 %v1887, %v1875
        %v1890 = vadd.f32 %v1888, 1e-05
        %v1891 = vadd.f32 %v1889, 1e-05
        %v1892 = vrsqrt.pop %v1890
        %v1893 = vrsqrt.pop %v1891
        %v1894 = vmul.f32 %v1878, %v1892
        %v1895 = vmul.f32 %v1879, %v1893
        %v1896 = vlaneseq
        %v1897 = vshrl.u32 %v1896, 7
        %v1898 = vsub.s32 4, %v1897
        %v1899 = vrot.slane %v633, %v1898
        %v1900 = vmul.f32 %v1894, %v1899
        %v1901 = vmul.f32 %v1895, %v1899
        %v1902 = vlaneseq
        %v1903 = vshrl.u32 %v1902, 7
        %v1904 = vsub.s32 5, %v1903
        %v1905 = vrot.slane %v633, %v1904
        %v1906 = vadd.f32 %v1900, %v1905
        %v1907 = vadd.f32 %v1901, %v1905
        %v1908 = vpack.c.bf16 %v1907, %v1906
        %v1909 = vld [vmem:[%s504] sm:$0xf]
        %v1910 = vld [vmem:[%s504 + $0x4] sm:$0xf]
        %v1911 = vld [vmem:[%s504 + $0x8] sm:$0xf]
        %v1912 = vld [vmem:[%s504 + $0xc] sm:$0xf]
        %v1913 = vlaneseq
        %v1914 = vshrl.u32 %v1913, 7
        %v1915 = vsub.s32 1, %v1914
        %v1916 = vrot.slane %v634, %v1915
        %v1921 = vunpack.c.l.b16 %v1909
        %v1922 = vunpack.c.l.b16 %v1910
        %v1923 = vunpack.c.l.b16 %v1911
        %v1924 = vunpack.c.l.b16 %v1912
        %v1925 = vpack.c.b16 %v1922, %v1921
        %v1926 = vpack.c.b16 %v1924, %v1923
        %v1930 = vsel %vm651, %v1908, 0
        %1932 = vmatprep.subr.bf16.mxu0 0
        %1933 = vmatpush1.bf16.msra.mxu0 %v1925
        %1934 = vmatprep.subr.bf16.mxu0 0
        %1935 = vmatpush1.bf16.msra.mxu0 %v1926
        %1936 = vmatprep.subr.bf16.mxu0 0
        %1937 = vmatpush1.bf16.msra.mxu0 0
        %1938 = vmatprep.subr.bf16.mxu0 0
        %1939 = vmatpush1.bf16.msra.mxu0 0
        %1940 = vmatprep.subr.bf16.mxu0 0
        %1941 = vmatpush1.bf16.msra.mxu0 0
        %1942 = vmatprep.subr.bf16.mxu0 0
        %1943 = vmatpush1.bf16.msra.mxu0 0
        %1944 = vmatprep.subr.bf16.mxu0 0
        %1945 = vmatpush1.bf16.msra.mxu0 0
        %1946 = vmatprep.subr.bf16.mxu0 0
        %1947 = vmatpush1.bf16.msra.mxu0 0
        %1948 = vmatprep.subr.bf16.mxu0 0
        %1949 = vmatpush1.bf16.msra.mxu0 0
        %1950 = vmatprep.subr.bf16.mxu0 0
        %1951 = vmatpush1.bf16.msra.mxu0 0
        %1952 = vmatprep.subr.bf16.mxu0 0
        %1953 = vmatpush1.bf16.msra.mxu0 0
        %1954 = vmatprep.subr.bf16.mxu0 0
        %1955 = vmatpush1.bf16.msra.mxu0 0
        %1956 = vmatprep.subr.bf16.mxu0 0
        %1957 = vmatpush1.bf16.msra.mxu0 0
        %1958 = vmatprep.subr.bf16.mxu0 0
        %1959 = vmatpush1.bf16.msra.mxu0 0
        %1960 = vmatprep.subr.bf16.mxu0 0
        %1961 = vmatpush1.bf16.msra.mxu0 0
        %1962 = vmatprep.subr.bf16.mxu0 0
        %1963 = vmatpush1.bf16.msra.mxu0 0
        %1964 = vmatprep.mubr.bf16.mxu0 0
        %1965 = vmatmul.mubr.bf16.gmra.mrb[0].mxu0 %v1930
        %v1966 = vpop.f32.mrb[0].mxu0
        %v1967 = vadd.f32 %v1916, %v1966
        %v1968 = vpop.f32.mrb[0].mxu0
        %v1969 = vpop.f32.mrb[0].mxu0
        %v1970 = vadd.f32 %v1916, %v1969
        %v1971 = vpop.f32.mrb[0].mxu0
        %1972 = vdwg.mxu0
        %v1973 = vmax.f32 %v1967, 0.0
        %v1974 = vmax.f32 %v1970, 0.0
        %v1975 = vpack.c.bf16 %v1974, %v1973
        %v1976 = vld [vmem:[%s513] sm:$0xf]
        %v1977 = vld [vmem:[%s513 + $0x4] sm:$0xf]
        %v1978 = vld [vmem:[%s513 + $0x8] sm:$0xf]
        %v1979 = vld [vmem:[%s513 + $0xc] sm:$0xf]
        %v1980 = vld [vmem:[%s513 + $0x10] sm:$0xf]
        %v1981 = vld [vmem:[%s513 + $0x14] sm:$0xf]
        %v1982 = vld [vmem:[%s513 + $0x18] sm:$0xf]
        %v1983 = vld [vmem:[%s513 + $0x1c] sm:$0xf]
        %v1984 = vlaneseq
        %v1985 = vshrl.u32 %v1984, 7
        %v1986 = vsub.s32 6, %v1985
        %v1987 = vrot.slane %v633, %v1986
        %v1996 = vunpack.c.l.b16 %v1976
        %v1997 = vunpack.c.l.b16 %v1977
        %v1998 = vunpack.c.l.b16 %v1978
        %v1999 = vunpack.c.l.b16 %v1979
        %v2000 = vunpack.c.l.b16 %v1980
        %v2001 = vunpack.c.l.b16 %v1981
        %v2002 = vunpack.c.l.b16 %v1982
        %v2003 = vunpack.c.l.b16 %v1983
        %v2004 = vpack.c.b16 %v1997, %v1996
        %v2005 = vpack.c.b16 %v1999, %v1998
        %v2006 = vpack.c.b16 %v2001, %v2000
        %v2007 = vpack.c.b16 %v2003, %v2002
        %vm2012 = vcmask 523264
        %v2014 = vsel %vm2012, %v1975, 0
        %2016 = vmatprep.subr.bf16.mxu0 0
        %2017 = vmatpush1.bf16.msra.mxu0 %v2004
        %2018 = vmatprep.subr.bf16.mxu0 0
        %2019 = vmatpush1.bf16.msra.mxu0 %v2005
        %2020 = vmatprep.subr.bf16.mxu0 0
        %2021 = vmatpush1.bf16.msra.mxu0 %v2006
        %2022 = vmatprep.subr.bf16.mxu0 0
        %2023 = vmatpush1.bf16.msra.mxu0 %v2007
        %2024 = vmatprep.subr.bf16.mxu0 0
        %2025 = vmatpush1.bf16.msra.mxu0 0
        %2026 = vmatprep.subr.bf16.mxu0 0
        %2027 = vmatpush1.bf16.msra.mxu0 0
        %2028 = vmatprep.subr.bf16.mxu0 0
        %2029 = vmatpush1.bf16.msra.mxu0 0
        %2030 = vmatprep.subr.bf16.mxu0 0
        %2031 = vmatpush1.bf16.msra.mxu0 0
        %2032 = vmatprep.subr.bf16.mxu0 0
        %2033 = vmatpush1.bf16.msra.mxu0 0
        %2034 = vmatprep.subr.bf16.mxu0 0
        %2035 = vmatpush1.bf16.msra.mxu0 0
        %2036 = vmatprep.subr.bf16.mxu0 0
        %2037 = vmatpush1.bf16.msra.mxu0 0
        %2038 = vmatprep.subr.bf16.mxu0 0
        %2039 = vmatpush1.bf16.msra.mxu0 0
        %2040 = vmatprep.subr.bf16.mxu0 0
        %2041 = vmatpush1.bf16.msra.mxu0 0
        %2042 = vmatprep.subr.bf16.mxu0 0
        %2043 = vmatpush1.bf16.msra.mxu0 0
        %2044 = vmatprep.subr.bf16.mxu0 0
        %2045 = vmatpush1.bf16.msra.mxu0 0
        %2046 = vmatprep.subr.bf16.mxu0 0
        %2047 = vmatpush1.bf16.msra.mxu0 0
        %2048 = vmatprep.mubr.bf16.mxu0 0
        %2049 = vmatmul.mubr.bf16.gmra.mrb[0].mxu0 %v2014
        %v2050 = vpop.f32.mrb[0].mxu0
        %v2051 = vadd.f32 %v1987, %v2050
        %v2052 = vpop.f32.mrb[0].mxu0
        %v2053 = vpop.f32.mrb[0].mxu0
        %v2054 = vadd.f32 %v1987, %v2053
        %v2055 = vpop.f32.mrb[0].mxu0
        %2056 = vdwg.mxu0
        %v2057 = vadd.f32 %v1906, %v2051
        %v2058 = vadd.f32 %v1907, %v2054
        %v2059 = vsel %vm651, %v2057, 0.0
        %2060 = vadd.xlane.f32.xlu0 %v2059
        %v2061 = vpop.xlane.xlu0 %2060
        %v2062 = vsel %vm651, %v2058, 0.0
        %2063 = vadd.xlane.f32.xlu0 %v2062
        %v2064 = vpop.xlane.xlu0 %2063
        %v2065 = vmul.f32 %v2061, %v1875
        %v2066 = vmul.f32 %v2064, %v1875
        %v2067 = vsub.f32 %v2057, %v2065
        %v2068 = vsub.f32 %v2058, %v2066
        %v2069 = vmul.f32 %v2067, %v2067
        %v2070 = vmul.f32 %v2068, %v2068
        %v2071 = vsel %vm651, %v2069, 0.0
        %2072 = vadd.xlane.f32.xlu0 %v2071
        %v2073 = vpop.xlane.xlu0 %2072
        %v2074 = vsel %vm651, %v2070, 0.0
        %2075 = vadd.xlane.f32.xlu0 %v2074
        %v2076 = vpop.xlane.xlu0 %2075
        %v2077 = vmul.f32 %v2073, %v1875
        %v2078 = vmul.f32 %v2076, %v1875
        %v2079 = vadd.f32 %v2077, 1e-05
        %v2080 = vadd.f32 %v2078, 1e-05
        %v2081 = vrsqrt.pop %v2079
        %v2082 = vrsqrt.pop %v2080
        %v2083 = vmul.f32 %v2067, %v2081
        %v2084 = vmul.f32 %v2068, %v2082
        %v2085 = vlaneseq
        %v2086 = vshrl.u32 %v2085, 7
        %v2087 = vsub.s32 7, %v2086
        %v2088 = vrot.slane %v633, %v2087
        %v2089 = vmul.f32 %v2083, %v2088
        %v2090 = vmul.f32 %v2084, %v2088
        %v2091 = vlaneseq
        %v2092 = vshrl.u32 %v2091, 7
        %v2093 = vsub.s32 0, %v2092
        %v2094 = vrot.slane %v634, %v2093
        %v2095 = vadd.f32 %v2089, %v2094
        %v2096 = vadd.f32 %v2090, %v2094
        %2097 = vst.msk [vmem:[#allocation19] sm:$0xff] %vm651, %v2095
        %2098 = vst.msk [vmem:[#allocation19 + $0x8] sm:$0xff] %vm651, %v2096
        // Predicated region
        $region97: #{tpu_custom_call.1} parent=55 // pred_check
          %p2099 = pneg %p278
        $region98: #{tpu_custom_call.1} parent=55 // pred_check_branch
          %2101 = sbr.rel (%p2099) target = $region100
        $region99: #{tpu_custom_call.1} parent=55 // pred_region
          %s2102 = smul.u32 2, %s28
          %s2104 = ssub.s32 256, 256
          %2105 = vsyncadd [#allocation8], %s2104
          %s2106 = smul.addr %s2102, 128
          %s2107 = scalar_lea.hbm %s9, %s2106
          %s2108 = sshll.u32 [#allocation19], 4
          %s2109 = int_to_ptr.vmem [resolvable:$true] %s2108
          %2114 = dma.vmem_to_hbm [thread:$0]  %s2109, 256, %s2107, [#allocation8], 128, 128, 8
        $region100: #{tpu_custom_call.1} parent=55 // pred_fallthru
          _
        // Predicated region
        $region101: #{tpu_custom_call.1} parent=55 // pred_check
          %p2115 = pneg %p278
        $region102: #{tpu_custom_call.1} parent=55 // pred_check_branch
          %2117 = sbr.rel (%p2115) target = $region104
        $region103: #{tpu_custom_call.1} parent=55 // pred_region
          %2118 = dma.done [#allocation8], 256
        $region104: #{tpu_custom_call.1} parent=55 // pred_fallthru
          _
      $region56: #{tpu_custom_call.1} parent=5 // pred_fallthru
        _
      %p2119 = scmp.le.s32.totalorder 2, %s19
      // Predicated region
      $region105: #{tpu_custom_call.1} parent=5 // pred_check
        %p2120 = pneg %p2119
      $region106: #{tpu_custom_call.1} parent=5 // pred_check_branch
        %2122 = sbr.rel (%p2120) target = $region108
      $region107: #{tpu_custom_call.1} parent=5 // pred_region
        %s2123 = ssub.s32 %s19, 2
      $region108: #{tpu_custom_call.1} parent=5 // pred_fallthru
        _
    $region6: #{tpu_custom_call.1} parent=1 // loop_footer
      %s23 = sadd.s32 1, %s19
    $region7: #{tpu_custom_call.1} parent=1 // loop_footer_branch
      %18 = sbr.rel target = $region3
    $region8: #{tpu_custom_call.1} parent=1 // loop_exit
      _
    %2124 = vsyncpa [#allocation7], 1
    %s2125 = scalar_lea.sflag [#allocation7], 1
    %2126 = vsyncpa %s2125, 1
    %2127 = vsyncpa [#allocation10], 1
    %2128 = vsyncpa [#allocation13], 1
    %2129 = vsyncpa [#allocation8], 1
    %s2130 = scalar_lea.sflag [#allocation8], 1
    %2131 = vsyncpa %s2130, 1

</llo_original>
